<compile_context>
chip_gen: v7x
topology: tpu7x:2x2x1
jax: 0.10.0
libtpu: 0.0.40
codegen_flags: <defaults>
</compile_context>

<pallas_src>
import jax
import jax.numpy as jnp
from jax.experimental import pallas as pl
from jax.experimental.pallas import tpu as pltpu

LANE = 128


def _round_up(x, m):
    return (x + m - 1) // m * m


def _bottleneck_kernel(xt_ref, xtop_ref, xbot_ref,
                       w1_ref, b1_ref, w2_ref, b2_ref, w3_ref, b3_ref,
                       o_ref, xwin_ref):
    _, TH, W, Cp = xt_ref.shape
    Pp = w1_ref.shape[2]
    Op = w3_ref.shape[1]
    WIN = (TH + 2) * W                         # rows of the haloed window

    # Assemble the (TH+2)-row bf16 input window in VMEM scratch:
    # [halo row above | tile rows | halo row below].
    xwin_ref[0:1] = xtop_ref[0]
    xwin_ref[1:TH + 1] = xt_ref[0]
    xwin_ref[TH + 1:TH + 2] = xbot_ref[0]
    xw = xwin_ref[...].reshape(WIN, Cp)        # bf16, lane-dense

    # ---- conv1 (1x1) + bn1 bias + relu (BN scale folded into w1) ----
    h = jnp.dot(xw, w1_ref[0], preferred_element_type=jnp.float32)
    h = jnp.maximum(h + b1_ref[...], 0.0)      # (WIN, Pp) f32

    # Halo rows that fall outside the image must be exact zeros (conv2 is a
    # zero-'SAME'-padded conv of h); the clamped halo fetch would otherwise
    # leak relu(bn1(conv1(edge_row))) into the padding.  Thin (WIN, 1) mask.
    r = pl.program_id(1)
    last = pl.num_programs(1) - 1
    lin = jax.lax.broadcasted_iota(jnp.int32, (WIN, 1), 0)
    pad = ((lin < W) & (r == 0)) | ((lin >= (TH + 1) * W) & (r == last))
    h = jnp.where(pad, 0.0, h)

    # Left/right image-column predicates (vertical neighbours come from the
    # halo rows, so only the dx boundaries need masking).  Built once with the
    # proven lane-wide iota layout, reused for all taps.
    colw = jax.lax.broadcasted_iota(jnp.int32, (TH + 2, W, Pp), 1).reshape(WIN, Pp)
    lft = colw == 0
    rgt = colw == W - 1

    # ---- conv2 (3x3, stride 1, pad 1) + bn2 bias + relu ----
    # Per-tap accumulation: tap (dy, dx) is a roll of the flattened window
    # (XLU, otherwise idle); each tap does one K=Pp matmul accumulated in f32.
    # Wrapped roll values only land in the discarded halo rows or masked lanes.
    acc = None
    for t, (dy, dx) in enumerate((dy, dx) for dy in range(3) for dx in range(3)):
        off = (dy - 1) * W + (dx - 1)
        rolled = h if off == 0 else pltpu.roll(h, (-off) % WIN, 0)
        tap = rolled.astype(jnp.bfloat16)      # mask on packed bf16
        if dx == 0:
            tap = jnp.where(lft, jnp.zeros_like(tap), tap)
        elif dx == 2:
            tap = jnp.where(rgt, jnp.zeros_like(tap), tap)
        part = jnp.dot(tap, w2_ref[t], preferred_element_type=jnp.float32)
        acc = part if acc is None else acc + part

    acc = acc[W:(TH + 1) * W, :]               # keep the TH output rows
    h2 = jnp.maximum(acc + b2_ref[...], 0.0)   # (TH*W, Pp) f32

    # ---- conv3 (1x1) + bn3 bias + residual add + relu ----
    h3 = jnp.dot(h2.astype(jnp.bfloat16), w3_ref[...],
                 preferred_element_type=jnp.float32)
    resid = xt_ref[0].reshape(TH * W, Cp).astype(jnp.float32)
    out = jnp.maximum(h3 + b3_ref[...] + resid, 0.0)
    o_ref[0] = out.reshape(TH, W, Op).astype(o_ref.dtype)   # bf16 writeback


def fold_bn(gamma, beta, mean, var, eps=1e-5):
    scale = gamma / jnp.sqrt(var + eps)
    bias = beta - mean * scale
    return scale, bias


def prepare_params(w1, s1, b1, w2, s2, b2, w3, s3, b3):
    """One-time (init-time) prep: fold eval-mode BN scales into conv weights,
    zero-pad channels to lane multiples, cast matmul operands to bf16.
    Not part of the per-forward hot path."""
    Cin, P = w1.shape
    Cout = w3.shape[1]
    Cp, Pp, Op = _round_up(Cin, LANE), _round_up(P, LANE), _round_up(Cout, LANE)
    f32, bf16 = jnp.float32, jnp.bfloat16

    w1p = (jnp.zeros((1, Cp, Pp), f32).at[0, :Cin, :P]
           .set(w1 * s1[None, :]).astype(bf16))
    w2f = w2 * s2[None, None, None, :]
    w2p = (jnp.zeros((3, 3, Pp, Pp), f32).at[:, :, :P, :P].set(w2f)
           .reshape(9, Pp, Pp).astype(bf16))
    w3p = jnp.zeros((Pp, Op), f32).at[:P, :Cout].set(w3 * s3[None, :]).astype(bf16)
    b1p = jnp.zeros((1, Pp), f32).at[0, :P].set(b1)
    b2p = jnp.zeros((1, Pp), f32).at[0, :P].set(b2)
    b3p = jnp.zeros((1, Op), f32).at[0, :Cout].set(b3)
    return dict(w1=w1p, b1=b1p, w2=w2p, b2=b2p, w3=w3p, b3=b3p,
                Cin=Cin, Cout=Cout, Cp=Cp, Pp=Pp, Op=Op)


def pad_channels_nhwc(x, Cp):
    """Lane-pad channels and cast to bf16.  In a real network activations stay
    in this layout between blocks, so this is a network-boundary cost only."""
    N, H, W, C = x.shape
    return (jnp.zeros((N, H, W, Cp), jnp.float32).at[..., :C].set(x)
            .astype(jnp.bfloat16))


def _pick_row_tile(H, W, Cp, Pp, n_batch, vmem_budget=12 * 1024 * 1024):
    """Largest row-tile TH (divisor of H) whose haloed window fits the VMEM
    budget, preferring tiles that give >= 8 grid steps (pipelining / 2 TCs)."""
    def tile_bytes(th):
        win = (th + 2) * W
        return (2 * win * Cp * 2          # x window, bf16 (double buffered)
                + 2 * win * Pp * 4        # h + conv2 accumulator, f32
                + 2 * th * W * Cp * 2)    # output block, bf16 (double buffered)
    fits = [d for d in range(1, H + 1) if H % d == 0 and tile_bytes(d) <= vmem_budget]
    if not fits:
        return 1  # TODO(synk): also tile W for extremely wide images
    pipelined = [d for d in fits if (H // d) * n_batch >= 8]
    return max(pipelined) if pipelined else max(fits)


def bottleneck_apply(xp, params):
    """Hot path.  xp: lane-padded bf16 NHWC activations (N, H, W, Cp).
    Returns lane-padded bf16 NHWC output (N, H, W, Op)."""
    N, H, W, Cp = xp.shape
    Pp, Op = params["Pp"], params["Op"]
    assert params["Cout"] == params["Cin"] and Op == Cp, (
        "identity residual requires planes * 4 == inplanes")
    # TODO(synk): stride != 1 and the downsample branch are not implemented.

    TH = _pick_row_tile(H, W, Cp, Pp, N)
    nt = H // TH

    def _const_spec(shape):
        nd = len(shape)
        return pl.BlockSpec(shape, lambda n, r: (0,) * nd)

    x_tile = pl.BlockSpec((1, TH, W, Cp), lambda n, r: (n, r, 0, 0))
    # Halo rows: one clamped row above / below the tile (block size 1 along H,
    # so the block index is the row index).  Clamped rows are only read at the
    # image border, where the kernel zeroes their conv2 contribution anyway.
    x_top = pl.BlockSpec((1, 1, W, Cp),
                         lambda n, r: (n, jnp.maximum(r * TH - 1, 0), 0, 0))
    x_bot = pl.BlockSpec((1, 1, W, Cp),
                         lambda n, r: (n, jnp.minimum(r * TH + TH, H - 1), 0, 0))

    return pl.pallas_call(
        _bottleneck_kernel,
        out_shape=jax.ShapeDtypeStruct((N, H, W, Op), jnp.bfloat16),
        grid=(N, nt),
        in_specs=[
            x_tile, x_top, x_bot,
            _const_spec((1, Cp, Pp)), _const_spec((1, Pp)),
            _const_spec((9, Pp, Pp)), _const_spec((1, Pp)),
            _const_spec((Pp, Op)), _const_spec((1, Op)),
        ],
        out_specs=pl.BlockSpec((1, TH, W, Op), lambda n, r: (n, r, 0, 0)),
        scratch_shapes=[pltpu.VMEM((TH + 2, W, Cp), jnp.bfloat16)],
        compiler_params=pltpu.CompilerParams(
            dimension_semantics=("parallel", "parallel"),
            vmem_limit_bytes=48 * 1024 * 1024),
    )(xp, xp, xp, params["w1"], params["b1"], params["w2"], params["b2"],
      params["w3"], params["b3"])


def reference_nhwc(x, w1, s1, b1, w2, s2, b2, w3, s3, b3):
    h = jnp.einsum('nhwc,cp->nhwp', x, w1) * s1 + b1
    h = jnp.maximum(h, 0.0)
    h = jax.lax.conv_general_dilated(
        h, w2, window_strides=(1, 1), padding='SAME',
        dimension_numbers=('NHWC', 'HWIO', 'NHWC'))
    h = h * s2 + b2
    h = jnp.maximum(h, 0.0)
    h = jnp.einsum('nhwp,po->nhwo', h, w3) * s3 + b3
    return jnp.maximum(h + x, 0.0)


if __name__ == "__main__":
    # Module config: inplanes=16, planes=4, expansion=4 -> out channels = 16.
    N, H, W = 2, 16, 16
    inplanes, planes = 16, 4
    cout = planes * 4

    key = jax.random.PRNGKey(0)
    ks = jax.random.split(key, 16)

    x_nchw = jax.random.normal(ks[0], (N, inplanes, H, W), jnp.float32)
    x_nhwc = jnp.transpose(x_nchw, (0, 2, 3, 1))

    # Conv weights (PyTorch OIHW -> (Cin,Cout) / HWIO layouts).
    w1 = 0.1 * jax.random.normal(ks[1], (inplanes, planes), jnp.float32)
    w2 = 0.1 * jax.random.normal(ks[2], (3, 3, planes, planes), jnp.float32)
    w3 = 0.1 * jax.random.normal(ks[3], (planes, cout), jnp.float32)

    def bn_params(kg, kb, km, kv, c):
        gamma = 1.0 + 0.1 * jax.random.normal(kg, (c,), jnp.float32)
        beta = 0.1 * jax.random.normal(kb, (c,), jnp.float32)
        mean = 0.1 * jax.random.normal(km, (c,), jnp.float32)
        var = 0.5 + jax.random.uniform(kv, (c,), jnp.float32)
        return fold_bn(gamma, beta, mean, var)

    s1, b1 = bn_params(ks[4], ks[5], ks[6], ks[7], planes)
    s2, b2 = bn_params(ks[8], ks[9], ks[10], ks[11], planes)
    s3, b3 = bn_params(ks[12], ks[13], ks[14], ks[15], cout)

    params = prepare_params(w1, s1, b1, w2, s2, b2, w3, s3, b3)
    xp = pad_channels_nhwc(x_nhwc, params["Cp"])

    out_p = bottleneck_apply(xp, params)
    out_p = jax.block_until_ready(out_p)

    out_nhwc = out_p[..., :cout].astype(jnp.float32)
    ref = reference_nhwc(x_nhwc, w1, s1, b1, w2, s2, b2, w3, s3, b3)
    max_err = float(jnp.max(jnp.abs(out_nhwc - ref)))
    # bf16 matmul operands, bf16 residual input and bf16 output writeback
    # => loosened tolerance vs the f32 reference.
    assert jnp.allclose(out_nhwc, ref, atol=5e-2, rtol=5e-2), (
        f"mismatch vs reference, max abs err {max_err}")

    # Back to NCHW to match the PyTorch module's output layout.
    out_nchw = jnp.transpose(out_nhwc, (0, 3, 1, 2))
    assert out_nchw.shape == (N, cout, H, W)

    print("KERNEL_OK")
</pallas_src>

<mosaic_0001>
module attributes {stable_mosaic.version = 11 : i64} {
  func.func @_bottleneck_kernel(%arg0: i32, %arg1: i32, %arg2: memref<1x4x16x128xbf16, #tpu.memory_space<vmem>>, %arg3: memref<1x1x16x128xbf16, #tpu.memory_space<vmem>>, %arg4: memref<1x1x16x128xbf16, #tpu.memory_space<vmem>>, %arg5: memref<1x128x128xbf16, #tpu.memory_space<vmem>>, %arg6: memref<1x128xf32, #tpu.memory_space<vmem>>, %arg7: memref<9x128x128xbf16, #tpu.memory_space<vmem>>, %arg8: memref<1x128xf32, #tpu.memory_space<vmem>>, %arg9: memref<128x128xbf16, #tpu.memory_space<vmem>>, %arg10: memref<1x128xf32, #tpu.memory_space<vmem>>, %arg11: memref<1x4x16x128xbf16, #tpu.memory_space<vmem>>, %arg12: memref<6x16x128xbf16, #tpu.memory_space<vmem>>) attributes {dimension_semantics = [#tpu.dimension_semantics<parallel>, #tpu.dimension_semantics<parallel>], iteration_bounds = array<i64: 2, 4>, scalar_prefetch = 0 : i64, scratch_operands = 1 : i64, tpu.core_type = #tpu.core_type<tc>, window_params = [{transform_indices = @transform_0, window_bounds = array<i64: 1, 4, 16, 128>}, {transform_indices = @transform_1, window_bounds = array<i64: 1, 1, 16, 128>}, {transform_indices = @transform_2, window_bounds = array<i64: 1, 1, 16, 128>}, {pipeline_mode = #tpu.pipeline_mode<synchronous>, transform_indices = @transform_3, window_bounds = array<i64: 1, 128, 128>}, {pipeline_mode = #tpu.pipeline_mode<synchronous>, transform_indices = @transform_4, window_bounds = array<i64: 1, 128>}, {pipeline_mode = #tpu.pipeline_mode<synchronous>, transform_indices = @transform_5, window_bounds = array<i64: 9, 128, 128>}, {pipeline_mode = #tpu.pipeline_mode<synchronous>, transform_indices = @transform_6, window_bounds = array<i64: 1, 128>}, {pipeline_mode = #tpu.pipeline_mode<synchronous>, transform_indices = @transform_7, window_bounds = array<i64: 128, 128>}, {pipeline_mode = #tpu.pipeline_mode<synchronous>, transform_indices = @transform_8, window_bounds = array<i64: 1, 128>}, {transform_indices = @transform_9, window_bounds = array<i64: 1, 4, 16, 128>}]} {
    %c0 = arith.constant 0 : index
    %c0_0 = arith.constant 0 : index
    %c0_1 = arith.constant 0 : index
    %c0_2 = arith.constant 0 : index
    %0 = vector.load %arg3[%c0, %c0_0, %c0_1, %c0_2] : memref<1x1x16x128xbf16, #tpu.memory_space<vmem>>, vector<1x1x16x128xbf16>
    %1 = vector.shape_cast %0 : vector<1x1x16x128xbf16> to vector<1x16x128xbf16>
    %c0_3 = arith.constant 0 : index
    %c0_4 = arith.constant 0 : index
    %c0_5 = arith.constant 0 : index
    %2 = vector.load %arg12[%c0_3, %c0_4, %c0_5] : memref<6x16x128xbf16, #tpu.memory_space<vmem>>, vector<1x16x128xbf16>
    tpu.vector_store %arg12[%c0_3, %c0_4, %c0_5], %1 {strides = array<i32>} : memref<6x16x128xbf16, #tpu.memory_space<vmem>>, vector<1x16x128xbf16>,
    %c0_6 = arith.constant 0 : index
    %c0_7 = arith.constant 0 : index
    %c0_8 = arith.constant 0 : index
    %c0_9 = arith.constant 0 : index
    %3 = vector.load %arg2[%c0_6, %c0_7, %c0_8, %c0_9] : memref<1x4x16x128xbf16, #tpu.memory_space<vmem>>, vector<1x4x16x128xbf16>
    %4 = vector.shape_cast %3 : vector<1x4x16x128xbf16> to vector<4x16x128xbf16>
    %c1 = arith.constant 1 : index
    %c0_10 = arith.constant 0 : index
    %c0_11 = arith.constant 0 : index
    %5 = vector.load %arg12[%c1, %c0_10, %c0_11] : memref<6x16x128xbf16, #tpu.memory_space<vmem>>, vector<4x16x128xbf16>
    tpu.vector_store %arg12[%c1, %c0_10, %c0_11], %4 {strides = array<i32>} : memref<6x16x128xbf16, #tpu.memory_space<vmem>>, vector<4x16x128xbf16>,
    %c0_12 = arith.constant 0 : index
    %c0_13 = arith.constant 0 : index
    %c0_14 = arith.constant 0 : index
    %c0_15 = arith.constant 0 : index
    %6 = vector.load %arg4[%c0_12, %c0_13, %c0_14, %c0_15] : memref<1x1x16x128xbf16, #tpu.memory_space<vmem>>, vector<1x1x16x128xbf16>
    %7 = vector.shape_cast %6 : vector<1x1x16x128xbf16> to vector<1x16x128xbf16>
    %c5 = arith.constant 5 : index
    %c0_16 = arith.constant 0 : index
    %c0_17 = arith.constant 0 : index
    %8 = vector.load %arg12[%c5, %c0_16, %c0_17] : memref<6x16x128xbf16, #tpu.memory_space<vmem>>, vector<1x16x128xbf16>
    tpu.vector_store %arg12[%c5, %c0_16, %c0_17], %7 {strides = array<i32>} : memref<6x16x128xbf16, #tpu.memory_space<vmem>>, vector<1x16x128xbf16>,
    %c0_18 = arith.constant 0 : index
    %c0_19 = arith.constant 0 : index
    %c0_20 = arith.constant 0 : index
    %9 = vector.load %arg12[%c0_18, %c0_19, %c0_20] : memref<6x16x128xbf16, #tpu.memory_space<vmem>>, vector<6x16x128xbf16>
    %10 = vector.shape_cast %9 : vector<6x16x128xbf16> to vector<96x128xbf16>
    %c0_21 = arith.constant 0 : index
    %c0_22 = arith.constant 0 : index
    %c0_23 = arith.constant 0 : index
    %11 = vector.load %arg5[%c0_21, %c0_22, %c0_23] : memref<1x128x128xbf16, #tpu.memory_space<vmem>>, vector<1x128x128xbf16>
    %12 = vector.shape_cast %11 : vector<1x128x128xbf16> to vector<128x128xbf16>
    %cst = arith.constant dense<0.000000e+00> : vector<96x128xf32>
    %13 = tpu.matmul %10, %12, %cst {dimension_numbers = #tpu.dot_dimension_numbers<[1], [0], [0], [1], [0, 0, 1, 1], [], []>} : vector<96x128xbf16>, vector<128x128xbf16>, vector<96x128xf32> -> vector<96x128xf32>
    %c0_24 = arith.constant 0 : index
    %c0_25 = arith.constant 0 : index
    %14 = vector.load %arg6[%c0_24, %c0_25] : memref<1x128xf32, #tpu.memory_space<vmem>>, vector<1x128xf32>
    %15 = vector.broadcast %14 : vector<1x128xf32> to vector<96x128xf32>
    %16 = arith.addf %13, %15 : vector<96x128xf32>
    %cst_26 = arith.constant 0.000000e+00 : f32
    %17 = vector.broadcast %cst_26 : f32 to vector<96x128xf32>
    %18 = arith.maximumf %16, %17 : vector<96x128xf32>
    %19 = tpu.iota {dimensions = array<i32: 0>} : vector<96x1xi32>
    %c16_i32 = arith.constant 16 : i32
    %20 = vector.broadcast %c16_i32 : i32 to vector<96x1xi32>
    %21 = arith.cmpi slt, %19, %20 : vector<96x1xi32>
    %c0_i32 = arith.constant 0 : i32
    %22 = arith.cmpi eq, %arg1, %c0_i32 : i32
    %23 = vector.broadcast %22 : i1 to vector<96x1xi1>
    %24 = arith.andi %21, %23 : vector<96x1xi1>
    %c80_i32 = arith.constant 80 : i32
    %25 = vector.broadcast %c80_i32 : i32 to vector<96x1xi32>
    %26 = arith.cmpi sge, %19, %25 : vector<96x1xi32>
    %c3_i32 = arith.constant 3 : i32
    %27 = arith.cmpi eq, %arg1, %c3_i32 : i32
    %28 = vector.broadcast %27 : i1 to vector<96x1xi1>
    %29 = arith.andi %26, %28 : vector<96x1xi1>
    %30 = arith.ori %24, %29 : vector<96x1xi1>
    %cst_27 = arith.constant 0.000000e+00 : f32
    %31 = vector.shape_cast %30 : vector<96x1xi1> to vector<96x1xi1>
    %32 = vector.broadcast %31 : vector<96x1xi1> to vector<96x128xi1>
    %33 = vector.broadcast %cst_27 : f32 to vector<96x128xf32>
    %34 = arith.select %32, %33, %18 : vector<96x128xi1>, vector<96x128xf32>
    %35 = tpu.iota {dimensions = array<i32: 1>} : vector<6x16x128xi32>
    %36 = vector.shape_cast %35 : vector<6x16x128xi32> to vector<96x128xi32>
    %c0_i32_28 = arith.constant 0 : i32
    %37 = vector.broadcast %c0_i32_28 : i32 to vector<96x128xi32>
    %38 = arith.cmpi eq, %36, %37 : vector<96x128xi32>
    %c15_i32 = arith.constant 15 : i32
    %39 = vector.broadcast %c15_i32 : i32 to vector<96x128xi32>
    %40 = arith.cmpi eq, %36, %39 : vector<96x128xi32>
    %c17_i32 = arith.constant 17 : i32
    %41 = tpu.dynamic_rotate %34 by %c17_i32 dim 0 : vector<96x128xf32>, i32 -> vector<96x128xf32>
    %42 = arith.truncf %41 : vector<96x128xf32> to vector<96x128xbf16>
    %cst_29 = arith.constant 0.000000e+00 : bf16
    %43 = vector.broadcast %cst_29 : bf16 to vector<96x128xbf16>
    %44 = arith.select %38, %43, %42 : vector<96x128xi1>, vector<96x128xbf16>
    %c0_30 = arith.constant 0 : index
    %c0_31 = arith.constant 0 : index
    %c0_32 = arith.constant 0 : index
    %45 = vector.load %arg7[%c0_30, %c0_31, %c0_32] : memref<9x128x128xbf16, #tpu.memory_space<vmem>>, vector<1x128x128xbf16>
    %46 = vector.shape_cast %45 : vector<1x128x128xbf16> to vector<128x128xbf16>
    %cst_33 = arith.constant dense<0.000000e+00> : vector<96x128xf32>
    %47 = tpu.matmul %44, %46, %cst_33 {dimension_numbers = #tpu.dot_dimension_numbers<[1], [0], [0], [1], [0, 0, 1, 1], [], []>} : vector<96x128xbf16>, vector<128x128xbf16>, vector<96x128xf32> -> vector<96x128xf32>
    %c16_i32_34 = arith.constant 16 : i32
    %48 = tpu.dynamic_rotate %34 by %c16_i32_34 dim 0 : vector<96x128xf32>, i32 -> vector<96x128xf32>
    %49 = arith.truncf %48 : vector<96x128xf32> to vector<96x128xbf16>
    %c1_35 = arith.constant 1 : index
    %c0_36 = arith.constant 0 : index
    %c0_37 = arith.constant 0 : index
    %50 = vector.load %arg7[%c1_35, %c0_36, %c0_37] : memref<9x128x128xbf16, #tpu.memory_space<vmem>>, vector<1x128x128xbf16>
    %51 = vector.shape_cast %50 : vector<1x128x128xbf16> to vector<128x128xbf16>
    %cst_38 = arith.constant dense<0.000000e+00> : vector<96x128xf32>
    %52 = tpu.matmul %49, %51, %cst_38 {dimension_numbers = #tpu.dot_dimension_numbers<[1], [0], [0], [1], [0, 0, 1, 1], [], []>} : vector<96x128xbf16>, vector<128x128xbf16>, vector<96x128xf32> -> vector<96x128xf32>
    %53 = arith.addf %47, %52 : vector<96x128xf32>
    %c15_i32_39 = arith.constant 15 : i32
    %54 = tpu.dynamic_rotate %34 by %c15_i32_39 dim 0 : vector<96x128xf32>, i32 -> vector<96x128xf32>
    %55 = arith.truncf %54 : vector<96x128xf32> to vector<96x128xbf16>
    %cst_40 = arith.constant 0.000000e+00 : bf16
    %56 = vector.broadcast %cst_40 : bf16 to vector<96x128xbf16>
    %57 = arith.select %40, %56, %55 : vector<96x128xi1>, vector<96x128xbf16>
    %c2 = arith.constant 2 : index
    %c0_41 = arith.constant 0 : index
    %c0_42 = arith.constant 0 : index
    %58 = vector.load %arg7[%c2, %c0_41, %c0_42] : memref<9x128x128xbf16, #tpu.memory_space<vmem>>, vector<1x128x128xbf16>
    %59 = vector.shape_cast %58 : vector<1x128x128xbf16> to vector<128x128xbf16>
    %cst_43 = arith.constant dense<0.000000e+00> : vector<96x128xf32>
    %60 = tpu.matmul %57, %59, %cst_43 {dimension_numbers = #tpu.dot_dimension_numbers<[1], [0], [0], [1], [0, 0, 1, 1], [], []>} : vector<96x128xbf16>, vector<128x128xbf16>, vector<96x128xf32> -> vector<96x128xf32>
    %61 = arith.addf %53, %60 : vector<96x128xf32>
    %c1_i32 = arith.constant 1 : i32
    %62 = tpu.dynamic_rotate %34 by %c1_i32 dim 0 : vector<96x128xf32>, i32 -> vector<96x128xf32>
    %63 = arith.truncf %62 : vector<96x128xf32> to vector<96x128xbf16>
    %cst_44 = arith.constant 0.000000e+00 : bf16
    %64 = vector.broadcast %cst_44 : bf16 to vector<96x128xbf16>
    %65 = arith.select %38, %64, %63 : vector<96x128xi1>, vector<96x128xbf16>
    %c3 = arith.constant 3 : index
    %c0_45 = arith.constant 0 : index
    %c0_46 = arith.constant 0 : index
    %66 = vector.load %arg7[%c3, %c0_45, %c0_46] : memref<9x128x128xbf16, #tpu.memory_space<vmem>>, vector<1x128x128xbf16>
    %67 = vector.shape_cast %66 : vector<1x128x128xbf16> to vector<128x128xbf16>
    %cst_47 = arith.constant dense<0.000000e+00> : vector<96x128xf32>
    %68 = tpu.matmul %65, %67, %cst_47 {dimension_numbers = #tpu.dot_dimension_numbers<[1], [0], [0], [1], [0, 0, 1, 1], [], []>} : vector<96x128xbf16>, vector<128x128xbf16>, vector<96x128xf32> -> vector<96x128xf32>
    %69 = arith.addf %61, %68 : vector<96x128xf32>
    %70 = arith.truncf %34 : vector<96x128xf32> to vector<96x128xbf16>
    %c4 = arith.constant 4 : index
    %c0_48 = arith.constant 0 : index
    %c0_49 = arith.constant 0 : index
    %71 = vector.load %arg7[%c4, %c0_48, %c0_49] : memref<9x128x128xbf16, #tpu.memory_space<vmem>>, vector<1x128x128xbf16>
    %72 = vector.shape_cast %71 : vector<1x128x128xbf16> to vector<128x128xbf16>
    %cst_50 = arith.constant dense<0.000000e+00> : vector<96x128xf32>
    %73 = tpu.matmul %70, %72, %cst_50 {dimension_numbers = #tpu.dot_dimension_numbers<[1], [0], [0], [1], [0, 0, 1, 1], [], []>} : vector<96x128xbf16>, vector<128x128xbf16>, vector<96x128xf32> -> vector<96x128xf32>
    %74 = arith.addf %69, %73 : vector<96x128xf32>
    %c95_i32 = arith.constant 95 : i32
    %75 = tpu.dynamic_rotate %34 by %c95_i32 dim 0 : vector<96x128xf32>, i32 -> vector<96x128xf32>
    %76 = arith.truncf %75 : vector<96x128xf32> to vector<96x128xbf16>
    %cst_51 = arith.constant 0.000000e+00 : bf16
    %77 = vector.broadcast %cst_51 : bf16 to vector<96x128xbf16>
    %78 = arith.select %40, %77, %76 : vector<96x128xi1>, vector<96x128xbf16>
    %c5_52 = arith.constant 5 : index
    %c0_53 = arith.constant 0 : index
    %c0_54 = arith.constant 0 : index
    %79 = vector.load %arg7[%c5_52, %c0_53, %c0_54] : memref<9x128x128xbf16, #tpu.memory_space<vmem>>, vector<1x128x128xbf16>
    %80 = vector.shape_cast %79 : vector<1x128x128xbf16> to vector<128x128xbf16>
    %cst_55 = arith.constant dense<0.000000e+00> : vector<96x128xf32>
    %81 = tpu.matmul %78, %80, %cst_55 {dimension_numbers = #tpu.dot_dimension_numbers<[1], [0], [0], [1], [0, 0, 1, 1], [], []>} : vector<96x128xbf16>, vector<128x128xbf16>, vector<96x128xf32> -> vector<96x128xf32>
    %82 = arith.addf %74, %81 : vector<96x128xf32>
    %c81_i32 = arith.constant 81 : i32
    %83 = tpu.dynamic_rotate %34 by %c81_i32 dim 0 : vector<96x128xf32>, i32 -> vector<96x128xf32>
    %84 = arith.truncf %83 : vector<96x128xf32> to vector<96x128xbf16>
    %cst_56 = arith.constant 0.000000e+00 : bf16
    %85 = vector.broadcast %cst_56 : bf16 to vector<96x128xbf16>
    %86 = arith.select %38, %85, %84 : vector<96x128xi1>, vector<96x128xbf16>
    %c6 = arith.constant 6 : index
    %c0_57 = arith.constant 0 : index
    %c0_58 = arith.constant 0 : index
    %87 = vector.load %arg7[%c6, %c0_57, %c0_58] : memref<9x128x128xbf16, #tpu.memory_space<vmem>>, vector<1x128x128xbf16>
    %88 = vector.shape_cast %87 : vector<1x128x128xbf16> to vector<128x128xbf16>
    %cst_59 = arith.constant dense<0.000000e+00> : vector<96x128xf32>
    %89 = tpu.matmul %86, %88, %cst_59 {dimension_numbers = #tpu.dot_dimension_numbers<[1], [0], [0], [1], [0, 0, 1, 1], [], []>} : vector<96x128xbf16>, vector<128x128xbf16>, vector<96x128xf32> -> vector<96x128xf32>
    %90 = arith.addf %82, %89 : vector<96x128xf32>
    %c80_i32_60 = arith.constant 80 : i32
    %91 = tpu.dynamic_rotate %34 by %c80_i32_60 dim 0 : vector<96x128xf32>, i32 -> vector<96x128xf32>
    %92 = arith.truncf %91 : vector<96x128xf32> to vector<96x128xbf16>
    %c7 = arith.constant 7 : index
    %c0_61 = arith.constant 0 : index
    %c0_62 = arith.constant 0 : index
    %93 = vector.load %arg7[%c7, %c0_61, %c0_62] : memref<9x128x128xbf16, #tpu.memory_space<vmem>>, vector<1x128x128xbf16>
    %94 = vector.shape_cast %93 : vector<1x128x128xbf16> to vector<128x128xbf16>
    %cst_63 = arith.constant dense<0.000000e+00> : vector<96x128xf32>
    %95 = tpu.matmul %92, %94, %cst_63 {dimension_numbers = #tpu.dot_dimension_numbers<[1], [0], [0], [1], [0, 0, 1, 1], [], []>} : vector<96x128xbf16>, vector<128x128xbf16>, vector<96x128xf32> -> vector<96x128xf32>
    %96 = arith.addf %90, %95 : vector<96x128xf32>
    %c79_i32 = arith.constant 79 : i32
    %97 = tpu.dynamic_rotate %34 by %c79_i32 dim 0 : vector<96x128xf32>, i32 -> vector<96x128xf32>
    %98 = arith.truncf %97 : vector<96x128xf32> to vector<96x128xbf16>
    %cst_64 = arith.constant 0.000000e+00 : bf16
    %99 = vector.broadcast %cst_64 : bf16 to vector<96x128xbf16>
    %100 = arith.select %40, %99, %98 : vector<96x128xi1>, vector<96x128xbf16>
    %c8 = arith.constant 8 : index
    %c0_65 = arith.constant 0 : index
    %c0_66 = arith.constant 0 : index
    %101 = vector.load %arg7[%c8, %c0_65, %c0_66] : memref<9x128x128xbf16, #tpu.memory_space<vmem>>, vector<1x128x128xbf16>
    %102 = vector.shape_cast %101 : vector<1x128x128xbf16> to vector<128x128xbf16>
    %cst_67 = arith.constant dense<0.000000e+00> : vector<96x128xf32>
    %103 = tpu.matmul %100, %102, %cst_67 {dimension_numbers = #tpu.dot_dimension_numbers<[1], [0], [0], [1], [0, 0, 1, 1], [], []>} : vector<96x128xbf16>, vector<128x128xbf16>, vector<96x128xf32> -> vector<96x128xf32>
    %104 = arith.addf %96, %103 : vector<96x128xf32>
    %105 = vector.extract_strided_slice %104 {offsets = [16, 0], sizes = [64, 128], strides = [1, 1]} : vector<96x128xf32> to vector<64x128xf32>
    %c0_68 = arith.constant 0 : index
    %c0_69 = arith.constant 0 : index
    %106 = vector.load %arg8[%c0_68, %c0_69] : memref<1x128xf32, #tpu.memory_space<vmem>>, vector<1x128xf32>
    %107 = vector.broadcast %106 : vector<1x128xf32> to vector<64x128xf32>
    %108 = arith.addf %105, %107 : vector<64x128xf32>
    %cst_70 = arith.constant 0.000000e+00 : f32
    %109 = vector.broadcast %cst_70 : f32 to vector<64x128xf32>
    %110 = arith.maximumf %108, %109 : vector<64x128xf32>
    %111 = arith.truncf %110 : vector<64x128xf32> to vector<64x128xbf16>
    %c0_71 = arith.constant 0 : index
    %c0_72 = arith.constant 0 : index
    %112 = vector.load %arg9[%c0_71, %c0_72] : memref<128x128xbf16, #tpu.memory_space<vmem>>, vector<128x128xbf16>
    %cst_73 = arith.constant dense<0.000000e+00> : vector<64x128xf32>
    %113 = tpu.matmul %111, %112, %cst_73 {dimension_numbers = #tpu.dot_dimension_numbers<[1], [0], [0], [1], [0, 0, 1, 1], [], []>} : vector<64x128xbf16>, vector<128x128xbf16>, vector<64x128xf32> -> vector<64x128xf32>
    %c0_74 = arith.constant 0 : index
    %c0_75 = arith.constant 0 : index
    %c0_76 = arith.constant 0 : index
    %c0_77 = arith.constant 0 : index
    %114 = vector.load %arg2[%c0_74, %c0_75, %c0_76, %c0_77] : memref<1x4x16x128xbf16, #tpu.memory_space<vmem>>, vector<1x4x16x128xbf16>
    %115 = vector.shape_cast %114 : vector<1x4x16x128xbf16> to vector<4x16x128xbf16>
    %116 = vector.shape_cast %115 : vector<4x16x128xbf16> to vector<64x128xbf16>
    %117 = arith.extf %116 : vector<64x128xbf16> to vector<64x128xf32>
    %c0_78 = arith.constant 0 : index
    %c0_79 = arith.constant 0 : index
    %118 = vector.load %arg10[%c0_78, %c0_79] : memref<1x128xf32, #tpu.memory_space<vmem>>, vector<1x128xf32>
    %119 = vector.broadcast %118 : vector<1x128xf32> to vector<64x128xf32>
    %120 = arith.addf %113, %119 : vector<64x128xf32>
    %121 = arith.addf %120, %117 : vector<64x128xf32>
    %cst_80 = arith.constant 0.000000e+00 : f32
    %122 = vector.broadcast %cst_80 : f32 to vector<64x128xf32>
    %123 = arith.maximumf %121, %122 : vector<64x128xf32>
    %124 = vector.shape_cast %123 : vector<64x128xf32> to vector<4x16x128xf32>
    %125 = arith.truncf %124 : vector<4x16x128xf32> to vector<4x16x128xbf16>
    %c0_81 = arith.constant 0 : index
    %c0_82 = arith.constant 0 : index
    %c0_83 = arith.constant 0 : index
    %c0_84 = arith.constant 0 : index
    %126 = vector.load %arg11[%c0_81, %c0_82, %c0_83, %c0_84] : memref<1x4x16x128xbf16, #tpu.memory_space<vmem>>, vector<1x4x16x128xbf16>
    %127 = vector.shape_cast %126 : vector<1x4x16x128xbf16> to vector<4x16x128xbf16>
    %128 = vector.shape_cast %125 : vector<4x16x128xbf16> to vector<1x4x16x128xbf16>
    tpu.vector_store %arg11[%c0_81, %c0_82, %c0_83, %c0_84], %128 {strides = array<i32>} : memref<1x4x16x128xbf16, #tpu.memory_space<vmem>>, vector<1x4x16x128xbf16>,
    return
  }
  func.func @transform_0(%arg0: i32, %arg1: i32) -> (i32, i32, i32, i32) {
    %c0_i32 = arith.constant 0 : i32
    %c0_i32_0 = arith.constant 0 : i32
    %c0_i32_1 = arith.constant 0 : i32
    return %arg0, %arg1, %c0_i32, %c0_i32_0 : i32, i32, i32, i32
  }
  func.func @transform_1(%arg0: i32, %arg1: i32) -> (i32, i32, i32, i32) {
    %c4_i32 = arith.constant 4 : i32
    %0 = arith.muli %arg1, %c4_i32 : i32
    %c1_i32 = arith.constant 1 : i32
    %1 = arith.subi %0, %c1_i32 : i32
    %c0_i32 = arith.constant 0 : i32
    %2 = arith.maxsi %1, %c0_i32 : i32
    %c0_i32_0 = arith.constant 0 : i32
    %c0_i32_1 = arith.constant 0 : i32
    %c0_i32_2 = arith.constant 0 : i32
    return %arg0, %2, %c0_i32_0, %c0_i32_1 : i32, i32, i32, i32
  }
  func.func @transform_2(%arg0: i32, %arg1: i32) -> (i32, i32, i32, i32) {
    %c4_i32 = arith.constant 4 : i32
    %0 = arith.muli %arg1, %c4_i32 : i32
    %c4_i32_0 = arith.constant 4 : i32
    %1 = arith.addi %0, %c4_i32_0 : i32
    %c15_i32 = arith.constant 15 : i32
    %2 = arith.minsi %1, %c15_i32 : i32
    %c0_i32 = arith.constant 0 : i32
    %c0_i32_1 = arith.constant 0 : i32
    %c0_i32_2 = arith.constant 0 : i32
    return %arg0, %2, %c0_i32, %c0_i32_1 : i32, i32, i32, i32
  }
  func.func @transform_3(%arg0: i32, %arg1: i32) -> (i32, i32, i32) {
    %c0_i32 = arith.constant 0 : i32
    %c0_i32_0 = arith.constant 0 : i32
    %c0_i32_1 = arith.constant 0 : i32
    %c0_i32_2 = arith.constant 0 : i32
    return %c0_i32, %c0_i32_0, %c0_i32_1 : i32, i32, i32
  }
  func.func @transform_4(%arg0: i32, %arg1: i32) -> (i32, i32) {
    %c0_i32 = arith.constant 0 : i32
    %c0_i32_0 = arith.constant 0 : i32
    %c0_i32_1 = arith.constant 0 : i32
    return %c0_i32, %c0_i32_0 : i32, i32
  }
  func.func @transform_5(%arg0: i32, %arg1: i32) -> (i32, i32, i32) {
    %c0_i32 = arith.constant 0 : i32
    %c0_i32_0 = arith.constant 0 : i32
    %c0_i32_1 = arith.constant 0 : i32
    %c0_i32_2 = arith.constant 0 : i32
    return %c0_i32, %c0_i32_0, %c0_i32_1 : i32, i32, i32
  }
  func.func @transform_6(%arg0: i32, %arg1: i32) -> (i32, i32) {
    %c0_i32 = arith.constant 0 : i32
    %c0_i32_0 = arith.constant 0 : i32
    %c0_i32_1 = arith.constant 0 : i32
    return %c0_i32, %c0_i32_0 : i32, i32
  }
  func.func @transform_7(%arg0: i32, %arg1: i32) -> (i32, i32) {
    %c0_i32 = arith.constant 0 : i32
    %c0_i32_0 = arith.constant 0 : i32
    %c0_i32_1 = arith.constant 0 : i32
    return %c0_i32, %c0_i32_0 : i32, i32
  }
  func.func @transform_8(%arg0: i32, %arg1: i32) -> (i32, i32) {
    %c0_i32 = arith.constant 0 : i32
    %c0_i32_0 = arith.constant 0 : i32
    %c0_i32_1 = arith.constant 0 : i32
    return %c0_i32, %c0_i32_0 : i32, i32
  }
  func.func @transform_9(%arg0: i32, %arg1: i32) -> (i32, i32, i32, i32) {
    %c0_i32 = arith.constant 0 : i32
    %c0_i32_0 = arith.constant 0 : i32
    %c0_i32_1 = arith.constant 0 : i32
    return %arg0, %arg1, %c0_i32, %c0_i32_0 : i32, i32, i32, i32
  }
}

</mosaic_0001>

<llo_original>
// kernel: tpu_custom_call.1
$region0: #{tpu_custom_call.1}
  #allocation0 [shape = 'u32[]', space=smem, size = 0x4, offset = 0x4, fixed_abs, tag = 'smem constant byte address 0x4 - core index']
  #allocation1 [shape = 'u32[144,128]{1,0:T(1,128)}', space=vmem, size = 0x12000, scoped, tag = 'internal scratch']
  #allocation2 [shape = 'bf16[6,16,128]{2,1,0:T(16,128)(2,1)}', space=vmem, size = 0x6000, scoped, tag = 'scratch operand']
  %s0 = inlined_call_operand.hbm [shape: bf16[2,16,16,128], index: 0, kind: input, shape index: {}]
  %s1 = inlined_call_operand.hbm [shape: bf16[2,16,16,128], index: 1, kind: input, shape index: {}]
  %s2 = inlined_call_operand.hbm [shape: bf16[2,16,16,128], index: 2, kind: input, shape index: {}]
  %s3 = inlined_call_operand.hbm [shape: bf16[1,128,128], index: 3, kind: input, shape index: {}]
  %s4 = inlined_call_operand.vmem [shape: f32[1,128], index: 4, kind: input, shape index: {}]
  %s5 = inlined_call_operand.hbm [shape: bf16[9,128,128], index: 5, kind: input, shape index: {}]
  %s6 = inlined_call_operand.vmem [shape: f32[1,128], index: 6, kind: input, shape index: {}]
  %s7 = inlined_call_operand.hbm [shape: bf16[128,128], index: 7, kind: input, shape index: {}]
  %s8 = inlined_call_operand.vmem [shape: f32[1,128], index: 8, kind: input, shape index: {}]
  %s9 = inlined_call_operand.hbm [shape: bf16[2,16,16,128], index: 9, kind: output, shape index: {}]
  %s10 = sld [smem:[#allocation0]]
  $region93: #{tpu_custom_call.1} parent=0
    _
  %s12 = ssub.s32 1, %s10
  %s13 = scalar_select 0, %s12, %s10
  $region1: #{tpu_custom_call.1} parent=0
    #allocation3 [shape = 'u8[32768]{0}', space=vmem, size = 0x8000, scoped, tag = 'input window, operand 0']
    #allocation4 [shape = 's32[2]{0}', space=sflag, size = 0x8, scoped, tag = 'scoped memory for tpu_custom_call.1']
    #allocation5 [shape = 's32[2]{0}', space=sflag, size = 0x8, scoped, tag = 'scoped memory for tpu_custom_call.1']
    #allocation6 [shape = 'u8[8192]{0}', space=vmem, size = 0x2000, scoped, tag = 'input window, operand 1']
    #allocation7 [shape = 's32[2]{0}', space=sflag, size = 0x8, scoped, tag = 'scoped memory for tpu_custom_call.1']
    #allocation8 [shape = 'u8[8192]{0}', space=vmem, size = 0x2000, scoped, tag = 'input window, operand 2']
    #allocation9 [shape = 'u8[32768]{0}', space=vmem, size = 0x8000, scoped, tag = 'input window, operand 3, single buffered']
    #allocation10 [shape = 's32[1]{0}', space=sflag, size = 0x4, scoped, tag = 'scoped memory for tpu_custom_call.1']
    #allocation11 [shape = 'u8[294912]{0}', space=vmem, size = 0x48000, scoped, tag = 'input window, operand 5, single buffered']
    #allocation12 [shape = 'u8[32768]{0}', space=vmem, size = 0x8000, scoped, tag = 'input window, operand 7, single buffered']
    #allocation13 [shape = 's32[1]{0}', space=sflag, size = 0x4, scoped, tag = 'scoped memory for tpu_custom_call.1']
    #allocation14 [shape = 'u8[32768]{0}', space=vmem, size = 0x8000, scoped, tag = 'output window, operand 0']
    %14 = vsyncpa [#allocation4], 0
    %s15 = scalar_lea.sflag [#allocation4], 1
    %16 = vsyncpa %s15, 0
    %17 = vsyncpa [#allocation7], 0
    %s18 = scalar_lea.sflag [#allocation7], 1
    %19 = vsyncpa %s18, 0
    %20 = vsyncpa [#allocation10], 0
    %21 = vsyncpa [#allocation13], 0
    %22 = vsyncpa [#allocation5], 0
    %s23 = scalar_lea.sflag [#allocation5], 1
    %24 = vsyncpa %s23, 0
    loop: start=0, step=1, limit=10
    $region2: #{tpu_custom_call.1} parent=1 // loop_pre_header
      _
    $region3: #{tpu_custom_call.1} parent=1 // loop_header
      %s26 = sphi 0, %s30
      %p27 = scmp.ge.s32.totalorder %s26, 10
      %s33 = sphi 0, %s45
      %s34 = sphi 0, %s41
      %s35 = sphi 0, %s33
      %s36 = sphi 0, %s34
      %s37 = sphi 0, %s35
      %s38 = sphi 0, %s36
      %s50 = sphi 0, %s52
      %s53 = sphi 0, %s50
      %s54 = sphi 0, %s53
      %s70 = sphi 0, %s54
      %s86 = sphi 0, %s88
      %s89 = sphi 0, %s86
      %s90 = sphi 0, %s89
      %s106 = sphi 0, %s90
      %s122 = sphi 0, %s124
      %s125 = sphi 0, %s122
      %s126 = sphi 0, %s125
      %s142 = sphi 0, %s126
      %s146 = sphi 0, %s146
      %s148 = sphi 0, %s146
      %s149 = sphi 0, %s148
      %s163 = sphi 0, %s149
      %s167 = sphi 0, %s167
      %s169 = sphi 0, %s167
      %s170 = sphi 0, %s169
      %s184 = sphi 0, %s170
      %s188 = sphi 0, %s188
      %s190 = sphi 0, %s188
      %s191 = sphi 0, %s190
      %s205 = sphi 0, %s191
      %s209 = sphi 0, %s209
      %s211 = sphi 0, %s209
      %s212 = sphi 0, %s211
      %s226 = sphi 0, %s212
      %s230 = sphi 0, %s230
      %s232 = sphi 0, %s230
      %s233 = sphi 0, %s232
      %s247 = sphi 0, %s233
      %s251 = sphi 0, %s251
      %s253 = sphi 0, %s251
      %s254 = sphi 0, %s253
      %s268 = sphi 0, %s254
      %s276 = sphi 0, %s278
      %s279 = sphi 0, %s276
      %s280 = sphi 0, %s279
      %s296 = sphi 0, %s280
    $region4: #{tpu_custom_call.1} parent=1 // loop_header_branch
      %29 = sbr.rel (%p27) target = $region8
    $region5: #{tpu_custom_call.1} parent=1 // loop_body
      %s31 = ssub.s32 %s26, 1
      %s32 = ssub.s32 %s26, 2
      %s39 = sadd.s32 1, %s34
      %p40 = scmp.ge.s32.totalorder %s39, 4
      %s41 = scalar_select %p40, 0, %s39
      %s42 = sadd.s32 1, %s33
      %s43 = scalar_select %p40, %s42, %s33
      %p44 = scmp.ge.s32.totalorder %s43, 2
      %s45 = scalar_select %p44, 0, %s43
      %s46 = ssub.s32 %s33, %s45
      %s47 = ssub.s32 %s34, %s41
      %s48 = sor.u32 %s46, %s47
      %p49 = scmp.eq.s32.totalorder %s48, 0
      %s51 = sadd.s32 %s50, 1
      %s52 = scalar_select %p49, %s50, %s51
      %p55 = pneg %p49
      %p56 = scmp.eq.s32.totalorder %s26, 7
      %p57 = por %p55, %p56
      %p58 = scmp.ne.s32.totalorder %s50, %s53
      %p59 = scmp.eq.s32.totalorder %s26, 0
      %p60 = por %p58, %p59
      %p61 = scmp.ne.s32.totalorder %s50, %s53
      %p62 = scmp.eq.s32.totalorder %s31, 7
      %p63 = por %p61, %p62
      %p64 = scmp.ne.s32.totalorder %s53, %s54
      %p65 = scmp.eq.s32.totalorder %s31, 0
      %p66 = por %p64, %p65
      %p67 = scmp.ne.s32.totalorder %s53, %s54
      %p68 = scmp.eq.s32.totalorder %s32, 7
      %p69 = por %p67, %p68
      %p71 = scmp.ne.s32.totalorder %s54, %s70
      %p72 = scmp.eq.s32.totalorder %s32, 0
      %p73 = por %p71, %p72
      %s74 = smul.u32 %s34, 4
      %s75 = ssub.s32 %s74, 1
      %p76 = scmp.gt.s32.totalorder %s75, 0
      %s77 = scalar_select %p76, %s75, 0
      %s78 = smul.u32 %s41, 4
      %s79 = ssub.s32 %s78, 1
      %p80 = scmp.gt.s32.totalorder %s79, 0
      %s81 = scalar_select %p80, %s79, 0
      %s82 = ssub.s32 %s33, %s45
      %s83 = ssub.s32 %s77, %s81
      %s84 = sor.u32 %s82, %s83
      %p85 = scmp.eq.s32.totalorder %s84, 0
      %s87 = sadd.s32 %s86, 1
      %s88 = scalar_select %p85, %s86, %s87
      %p91 = pneg %p85
      %p92 = scmp.eq.s32.totalorder %s26, 7
      %p93 = por %p91, %p92
      %p94 = scmp.ne.s32.totalorder %s86, %s89
      %p95 = scmp.eq.s32.totalorder %s26, 0
      %p96 = por %p94, %p95
      %p97 = scmp.ne.s32.totalorder %s86, %s89
      %p98 = scmp.eq.s32.totalorder %s31, 7
      %p99 = por %p97, %p98
      %p100 = scmp.ne.s32.totalorder %s89, %s90
      %p101 = scmp.eq.s32.totalorder %s31, 0
      %p102 = por %p100, %p101
      %p103 = scmp.ne.s32.totalorder %s89, %s90
      %p104 = scmp.eq.s32.totalorder %s32, 7
      %p105 = por %p103, %p104
      %p107 = scmp.ne.s32.totalorder %s90, %s106
      %p108 = scmp.eq.s32.totalorder %s32, 0
      %p109 = por %p107, %p108
      %s110 = smul.u32 %s34, 4
      %s111 = sadd.s32 %s110, 4
      %p112 = scmp.lt.s32.totalorder %s111, 15
      %s113 = scalar_select %p112, %s111, 15
      %s114 = smul.u32 %s41, 4
      %s115 = sadd.s32 %s114, 4
      %p116 = scmp.lt.s32.totalorder %s115, 15
      %s117 = scalar_select %p116, %s115, 15
      %s118 = ssub.s32 %s33, %s45
      %s119 = ssub.s32 %s113, %s117
      %s120 = sor.u32 %s118, %s119
      %p121 = scmp.eq.s32.totalorder %s120, 0
      %s123 = sadd.s32 %s122, 1
      %s124 = scalar_select %p121, %s122, %s123
      %p127 = pneg %p121
      %p128 = scmp.eq.s32.totalorder %s26, 7
      %p129 = por %p127, %p128
      %p130 = scmp.ne.s32.totalorder %s122, %s125
      %p131 = scmp.eq.s32.totalorder %s26, 0
      %p132 = por %p130, %p131
      %p133 = scmp.ne.s32.totalorder %s122, %s125
      %p134 = scmp.eq.s32.totalorder %s31, 7
      %p135 = por %p133, %p134
      %p136 = scmp.ne.s32.totalorder %s125, %s126
      %p137 = scmp.eq.s32.totalorder %s31, 0
      %p138 = por %p136, %p137
      %p139 = scmp.ne.s32.totalorder %s125, %s126
      %p140 = scmp.eq.s32.totalorder %s32, 7
      %p141 = por %p139, %p140
      %p143 = scmp.ne.s32.totalorder %s126, %s142
      %p144 = scmp.eq.s32.totalorder %s32, 0
      %p145 = por %p143, %p144
      %s147 = sadd.s32 %s146, 1
      %p150 = scmp.eq.s32.totalorder %s26, 7
      %p151 = scmp.ne.s32.totalorder %s146, %s148
      %p152 = scmp.eq.s32.totalorder %s26, 0
      %p153 = por %p151, %p152
      %p154 = scmp.ne.s32.totalorder %s146, %s148
      %p155 = scmp.eq.s32.totalorder %s31, 7
      %p156 = por %p154, %p155
      %p157 = scmp.ne.s32.totalorder %s148, %s149
      %p158 = scmp.eq.s32.totalorder %s31, 0
      %p159 = por %p157, %p158
      %p160 = scmp.ne.s32.totalorder %s148, %s149
      %p161 = scmp.eq.s32.totalorder %s32, 7
      %p162 = por %p160, %p161
      %p164 = scmp.ne.s32.totalorder %s149, %s163
      %p165 = scmp.eq.s32.totalorder %s32, 0
      %p166 = por %p164, %p165
      %s168 = sadd.s32 %s167, 1
      %p171 = scmp.eq.s32.totalorder %s26, 7
      %p172 = scmp.ne.s32.totalorder %s167, %s169
      %p173 = scmp.eq.s32.totalorder %s26, 0
      %p174 = por %p172, %p173
      %p175 = scmp.ne.s32.totalorder %s167, %s169
      %p176 = scmp.eq.s32.totalorder %s31, 7
      %p177 = por %p175, %p176
      %p178 = scmp.ne.s32.totalorder %s169, %s170
      %p179 = scmp.eq.s32.totalorder %s31, 0
      %p180 = por %p178, %p179
      %p181 = scmp.ne.s32.totalorder %s169, %s170
      %p182 = scmp.eq.s32.totalorder %s32, 7
      %p183 = por %p181, %p182
      %p185 = scmp.ne.s32.totalorder %s170, %s184
      %p186 = scmp.eq.s32.totalorder %s32, 0
      %p187 = por %p185, %p186
      %s189 = sadd.s32 %s188, 1
      %p192 = scmp.eq.s32.totalorder %s26, 7
      %p193 = scmp.ne.s32.totalorder %s188, %s190
      %p194 = scmp.eq.s32.totalorder %s26, 0
      %p195 = por %p193, %p194
      %p196 = scmp.ne.s32.totalorder %s188, %s190
      %p197 = scmp.eq.s32.totalorder %s31, 7
      %p198 = por %p196, %p197
      %p199 = scmp.ne.s32.totalorder %s190, %s191
      %p200 = scmp.eq.s32.totalorder %s31, 0
      %p201 = por %p199, %p200
      %p202 = scmp.ne.s32.totalorder %s190, %s191
      %p203 = scmp.eq.s32.totalorder %s32, 7
      %p204 = por %p202, %p203
      %p206 = scmp.ne.s32.totalorder %s191, %s205
      %p207 = scmp.eq.s32.totalorder %s32, 0
      %p208 = por %p206, %p207
      %s210 = sadd.s32 %s209, 1
      %p213 = scmp.eq.s32.totalorder %s26, 7
      %p214 = scmp.ne.s32.totalorder %s209, %s211
      %p215 = scmp.eq.s32.totalorder %s26, 0
      %p216 = por %p214, %p215
      %p217 = scmp.ne.s32.totalorder %s209, %s211
      %p218 = scmp.eq.s32.totalorder %s31, 7
      %p219 = por %p217, %p218
      %p220 = scmp.ne.s32.totalorder %s211, %s212
      %p221 = scmp.eq.s32.totalorder %s31, 0
      %p222 = por %p220, %p221
      %p223 = scmp.ne.s32.totalorder %s211, %s212
      %p224 = scmp.eq.s32.totalorder %s32, 7
      %p225 = por %p223, %p224
      %p227 = scmp.ne.s32.totalorder %s212, %s226
      %p228 = scmp.eq.s32.totalorder %s32, 0
      %p229 = por %p227, %p228
      %s231 = sadd.s32 %s230, 1
      %p234 = scmp.eq.s32.totalorder %s26, 7
      %p235 = scmp.ne.s32.totalorder %s230, %s232
      %p236 = scmp.eq.s32.totalorder %s26, 0
      %p237 = por %p235, %p236
      %p238 = scmp.ne.s32.totalorder %s230, %s232
      %p239 = scmp.eq.s32.totalorder %s31, 7
      %p240 = por %p238, %p239
      %p241 = scmp.ne.s32.totalorder %s232, %s233
      %p242 = scmp.eq.s32.totalorder %s31, 0
      %p243 = por %p241, %p242
      %p244 = scmp.ne.s32.totalorder %s232, %s233
      %p245 = scmp.eq.s32.totalorder %s32, 7
      %p246 = por %p244, %p245
      %p248 = scmp.ne.s32.totalorder %s233, %s247
      %p249 = scmp.eq.s32.totalorder %s32, 0
      %p250 = por %p248, %p249
      %s252 = sadd.s32 %s251, 1
      %p255 = scmp.eq.s32.totalorder %s26, 7
      %p256 = scmp.ne.s32.totalorder %s251, %s253
      %p257 = scmp.eq.s32.totalorder %s26, 0
      %p258 = por %p256, %p257
      %p259 = scmp.ne.s32.totalorder %s251, %s253
      %p260 = scmp.eq.s32.totalorder %s31, 7
      %p261 = por %p259, %p260
      %p262 = scmp.ne.s32.totalorder %s253, %s254
      %p263 = scmp.eq.s32.totalorder %s31, 0
      %p264 = por %p262, %p263
      %p265 = scmp.ne.s32.totalorder %s253, %s254
      %p266 = scmp.eq.s32.totalorder %s32, 7
      %p267 = por %p265, %p266
      %p269 = scmp.ne.s32.totalorder %s254, %s268
      %p270 = scmp.eq.s32.totalorder %s32, 0
      %p271 = por %p269, %p270
      %s272 = ssub.s32 %s33, %s45
      %s273 = ssub.s32 %s34, %s41
      %s274 = sor.u32 %s272, %s273
      %p275 = scmp.eq.s32.totalorder %s274, 0
      %s277 = sadd.s32 %s276, 1
      %s278 = scalar_select %p275, %s276, %s277
      %p281 = pneg %p275
      %p282 = scmp.eq.s32.totalorder %s26, 7
      %p283 = por %p281, %p282
      %p284 = scmp.ne.s32.totalorder %s276, %s279
      %p285 = scmp.eq.s32.totalorder %s26, 0
      %p286 = por %p284, %p285
      %p287 = scmp.ne.s32.totalorder %s276, %s279
      %p288 = scmp.eq.s32.totalorder %s31, 7
      %p289 = por %p287, %p288
      %p290 = scmp.ne.s32.totalorder %s279, %s280
      %p291 = scmp.eq.s32.totalorder %s31, 0
      %p292 = por %p290, %p291
      %p293 = scmp.ne.s32.totalorder %s279, %s280
      %p294 = scmp.eq.s32.totalorder %s32, 7
      %p295 = por %p293, %p294
      %p297 = scmp.ne.s32.totalorder %s280, %s296
      %p298 = scmp.eq.s32.totalorder %s32, 0
      %p299 = por %p297, %p298
      %p300 = scmp.le.s32.totalorder 1, %s26
      %p301 = scmp.lt.s32.totalorder %s26, 9
      %p302 = pnand %p300, %p301
      %p303 = pneg %p302
      // Predicated region
      $region9: #{tpu_custom_call.1} parent=5 // pred_check
        _
      $region10: #{tpu_custom_call.1} parent=5 // pred_check_branch
        %305 = sbr.rel (%p302) target = $region12
      $region11: #{tpu_custom_call.1} parent=5 // pred_region
        %s306 = ssub.s32 %s26, 1
        // Predicated region
        $region13: #{tpu_custom_call.1} parent=11 // pred_check
          %p307 = pneg %p159
        $region14: #{tpu_custom_call.1} parent=11 // pred_check_branch
          %309 = sbr.rel (%p307) target = $region16
        $region15: #{tpu_custom_call.1} parent=11 // pred_region
          %s311 = ssub.s32 1024, 1024
          %312 = vsyncadd [#allocation10], %s311
          %s313 = sshll.u32 [#allocation9], 4
          %s314 = int_to_ptr.vmem [resolvable:$true] %s313
          %319 = dma.hbm_to_vmem [thread:$0]  %s3, 1024, %s314, [#allocation10], 64, 64, 4
        $region16: #{tpu_custom_call.1} parent=11 // pred_fallthru
          _
        // Predicated region
        $region17: #{tpu_custom_call.1} parent=11 // pred_check
          %p320 = pneg %p180
        $region18: #{tpu_custom_call.1} parent=11 // pred_check_branch
          %322 = sbr.rel (%p320) target = $region20
        $region19: #{tpu_custom_call.1} parent=11 // pred_region
          _
        $region20: #{tpu_custom_call.1} parent=11 // pred_fallthru
          _
        // Predicated region
        $region21: #{tpu_custom_call.1} parent=11 // pred_check
          %p323 = pneg %p201
        $region22: #{tpu_custom_call.1} parent=11 // pred_check_branch
          %325 = sbr.rel (%p323) target = $region24
        $region23: #{tpu_custom_call.1} parent=11 // pred_region
          %s327 = ssub.s32 9216, 9216
          %328 = vsyncadd [#allocation10], %s327
          %s329 = sshll.u32 [#allocation11], 4
          %s330 = int_to_ptr.vmem [resolvable:$true] %s329
          %335 = dma.hbm_to_vmem [thread:$0]  %s5, 9216, %s330, [#allocation10], 64, 64, 4
        $region24: #{tpu_custom_call.1} parent=11 // pred_fallthru
          _
        // Predicated region
        $region25: #{tpu_custom_call.1} parent=11 // pred_check
          %p336 = pneg %p222
        $region26: #{tpu_custom_call.1} parent=11 // pred_check_branch
          %338 = sbr.rel (%p336) target = $region28
        $region27: #{tpu_custom_call.1} parent=11 // pred_region
          _
        $region28: #{tpu_custom_call.1} parent=11 // pred_fallthru
          _
        // Predicated region
        $region29: #{tpu_custom_call.1} parent=11 // pred_check
          %p339 = pneg %p243
        $region30: #{tpu_custom_call.1} parent=11 // pred_check_branch
          %341 = sbr.rel (%p339) target = $region32
        $region31: #{tpu_custom_call.1} parent=11 // pred_region
          %s343 = ssub.s32 1024, 1024
          %344 = vsyncadd [#allocation13], %s343
          %s345 = sshll.u32 [#allocation12], 4
          %s346 = int_to_ptr.vmem [resolvable:$true] %s345
          %351 = dma.hbm_to_vmem [thread:$0]  %s7, 1024, %s346, [#allocation13], 64, 64, 4
        $region32: #{tpu_custom_call.1} parent=11 // pred_fallthru
          _
        // Predicated region
        $region33: #{tpu_custom_call.1} parent=11 // pred_check
          %p352 = pneg %p264
        $region34: #{tpu_custom_call.1} parent=11 // pred_check_branch
          %354 = sbr.rel (%p352) target = $region36
        $region35: #{tpu_custom_call.1} parent=11 // pred_region
          _
        $region36: #{tpu_custom_call.1} parent=11 // pred_fallthru
          _
      $region12: #{tpu_custom_call.1} parent=5 // pred_fallthru
        _
      %p355 = scmp.lt.s32.totalorder %s26, 8
      // Predicated region
      $region37: #{tpu_custom_call.1} parent=5 // pred_check
        %p356 = pneg %p355
      $region38: #{tpu_custom_call.1} parent=5 // pred_check_branch
        %358 = sbr.rel (%p356) target = $region40
      $region39: #{tpu_custom_call.1} parent=5 // pred_region
        // Predicated region
        $region41: #{tpu_custom_call.1} parent=39 // pred_check
          %p359 = pneg %p60
        $region42: #{tpu_custom_call.1} parent=39 // pred_check_branch
          %361 = sbr.rel (%p359) target = $region44
        $region43: #{tpu_custom_call.1} parent=39 // pred_region
          %s362 = sand.u32 %s50, 1
          %s363 = scalar_lea.sflag [#allocation4], %s362
          %s364 = sand.u32 %s50, 1
          %s365 = smul.addr %s364, 32
          %s366 = scalar_lea.vmem [#allocation3], %s365
          %s367 = smul.u32 4, %s34
          %s369 = ssub.s32 512, 512
          %370 = vsyncadd %s363, %s369
          %s371 = smul.addr %s367, 2
          %s372 = smul.addr %s33, 32
          %s373 = sadd.s32 %s371, %s372
          %s374 = smul.addr %s373, 64
          %s375 = scalar_lea.hbm %s0, %s374
          %s376 = sshll.u32 %s366, 4
          %s377 = int_to_ptr.vmem [resolvable:$true] %s376
          %382 = dma.hbm_to_vmem [thread:$0]  %s375, 512, %s377, %s363, 64, 64, 4
        $region44: #{tpu_custom_call.1} parent=39 // pred_fallthru
          _
        // Predicated region
        $region45: #{tpu_custom_call.1} parent=39 // pred_check
          %p383 = pneg %p96
        $region46: #{tpu_custom_call.1} parent=39 // pred_check_branch
          %385 = sbr.rel (%p383) target = $region48
        $region47: #{tpu_custom_call.1} parent=39 // pred_region
          %s386 = sand.u32 %s26, 1
          %s387 = scalar_lea.sflag [#allocation7], %s386
          %s388 = sand.u32 %s86, 1
          %s389 = smul.addr %s388, 8
          %s390 = scalar_lea.vmem [#allocation6], %s389
          %s391 = smul.u32 %s34, 4
          %s392 = ssub.s32 %s391, 1
          %p393 = scmp.gt.s32.totalorder %s392, 0
          %s394 = scalar_select %p393, %s392, 0
          %s396 = ssub.s32 128, 128
          %397 = vsyncadd %s387, %s396
          %s398 = smul.addr %s394, 2
          %s399 = smul.addr %s33, 32
          %s400 = sadd.s32 %s398, %s399
          %s401 = smul.addr %s400, 64
          %s402 = scalar_lea.hbm %s1, %s401
          %s403 = sshll.u32 %s390, 4
          %s404 = int_to_ptr.vmem [resolvable:$true] %s403
          %409 = dma.hbm_to_vmem [thread:$0]  %s402, 128, %s404, %s387, 64, 64, 4
        $region48: #{tpu_custom_call.1} parent=39 // pred_fallthru
          _
        // Predicated region
        $region49: #{tpu_custom_call.1} parent=39 // pred_check
          %p410 = pneg %p132
        $region50: #{tpu_custom_call.1} parent=39 // pred_check_branch
          %412 = sbr.rel (%p410) target = $region52
        $region51: #{tpu_custom_call.1} parent=39 // pred_region
          %s413 = sand.u32 %s26, 1
          %s414 = scalar_lea.sflag [#allocation7], %s413
          %s415 = sand.u32 %s122, 1
          %s416 = smul.addr %s415, 8
          %s417 = scalar_lea.vmem [#allocation8], %s416
          %s418 = smul.u32 %s34, 4
          %s419 = sadd.s32 %s418, 4
          %p420 = scmp.lt.s32.totalorder %s419, 15
          %s421 = scalar_select %p420, %s419, 15
          %s423 = ssub.s32 128, 128
          %424 = vsyncadd %s414, %s423
          %s425 = smul.addr %s421, 2
          %s426 = smul.addr %s33, 32
          %s427 = sadd.s32 %s425, %s426
          %s428 = smul.addr %s427, 64
          %s429 = scalar_lea.hbm %s2, %s428
          %s430 = sshll.u32 %s417, 4
          %s431 = int_to_ptr.vmem [resolvable:$true] %s430
          %436 = dma.hbm_to_vmem [thread:$0]  %s429, 128, %s431, %s414, 64, 64, 4
        $region52: #{tpu_custom_call.1} parent=39 // pred_fallthru
          _
      $region40: #{tpu_custom_call.1} parent=5 // pred_fallthru
        _
      %p437 = scmp.le.s32.totalorder 1, %s26
      %p438 = scmp.lt.s32.totalorder %s26, 9
      %p439 = pnand %p437, %p438
      %p440 = pneg %p439
      // Predicated region
      $region53: #{tpu_custom_call.1} parent=5 // pred_check
        _
      $region54: #{tpu_custom_call.1} parent=5 // pred_check_branch
        %442 = sbr.rel (%p439) target = $region56
      $region55: #{tpu_custom_call.1} parent=5 // pred_region
        %s443 = ssub.s32 %s26, 1
        %s444 = sand.u32 %s53, 1
        %s445 = scalar_lea.sflag [#allocation4], %s444
        %s446 = sand.u32 %s53, 1
        %s447 = smul.addr %s446, 32
        %s448 = scalar_lea.vmem [#allocation3], %s447
        // Predicated region
        $region57: #{tpu_custom_call.1} parent=55 // pred_check
          %p449 = pneg %p66
        $region58: #{tpu_custom_call.1} parent=55 // pred_check_branch
          %451 = sbr.rel (%p449) target = $region60
        $region59: #{tpu_custom_call.1} parent=55 // pred_region
          %452 = dma.done %s445, 512
        $region60: #{tpu_custom_call.1} parent=55 // pred_fallthru
          _
        %s453 = sand.u32 %s31, 1
        %s454 = scalar_lea.sflag [#allocation7], %s453
        %s455 = sand.u32 %s89, 1
        %s456 = smul.addr %s455, 8
        %s457 = scalar_lea.vmem [#allocation6], %s456
        // Predicated region
        $region61: #{tpu_custom_call.1} parent=55 // pred_check
          %p458 = pneg %p102
        $region62: #{tpu_custom_call.1} parent=55 // pred_check_branch
          %460 = sbr.rel (%p458) target = $region64
        $region63: #{tpu_custom_call.1} parent=55 // pred_region
          %461 = dma.done %s454, 128
        $region64: #{tpu_custom_call.1} parent=55 // pred_fallthru
          _
        %s462 = sand.u32 %s31, 1
        %s463 = scalar_lea.sflag [#allocation7], %s462
        %s464 = sand.u32 %s125, 1
        %s465 = smul.addr %s464, 8
        %s466 = scalar_lea.vmem [#allocation8], %s465
        // Predicated region
        $region65: #{tpu_custom_call.1} parent=55 // pred_check
          %p467 = pneg %p138
        $region66: #{tpu_custom_call.1} parent=55 // pred_check_branch
          %469 = sbr.rel (%p467) target = $region68
        $region67: #{tpu_custom_call.1} parent=55 // pred_region
          %470 = dma.done %s463, 128
        $region68: #{tpu_custom_call.1} parent=55 // pred_fallthru
          _
        // Predicated region
        $region69: #{tpu_custom_call.1} parent=55 // pred_check
          %p471 = pneg %p159
        $region70: #{tpu_custom_call.1} parent=55 // pred_check_branch
          %473 = sbr.rel (%p471) target = $region72
        $region71: #{tpu_custom_call.1} parent=55 // pred_region
          %474 = dma.done [#allocation10], 1024
        $region72: #{tpu_custom_call.1} parent=55 // pred_fallthru
          _
        // Predicated region
        $region73: #{tpu_custom_call.1} parent=55 // pred_check
          %p475 = pneg %p201
        $region74: #{tpu_custom_call.1} parent=55 // pred_check_branch
          %477 = sbr.rel (%p475) target = $region76
        $region75: #{tpu_custom_call.1} parent=55 // pred_region
          %478 = dma.done [#allocation10], 9216
        $region76: #{tpu_custom_call.1} parent=55 // pred_fallthru
          _
        // Predicated region
        $region77: #{tpu_custom_call.1} parent=55 // pred_check
          %p479 = pneg %p243
        $region78: #{tpu_custom_call.1} parent=55 // pred_check_branch
          %481 = sbr.rel (%p479) target = $region80
        $region79: #{tpu_custom_call.1} parent=55 // pred_region
          %482 = dma.done [#allocation13], 1024
        $region80: #{tpu_custom_call.1} parent=55 // pred_fallthru
          _
        %s483 = sand.u32 %s53, 1
        %s484 = scalar_lea.sflag [#allocation4], %s483
        %s485 = sand.u32 %s53, 1
        %s486 = smul.addr %s485, 32
        %s487 = scalar_lea.vmem [#allocation3], %s486
        %p488 = pneg %p66
        %p489 = pneg %p63
        %s490 = sand.u32 %s31, 1
        %s491 = scalar_lea.sflag [#allocation7], %s490
        %s492 = sand.u32 %s89, 1
        %s493 = smul.addr %s492, 8
        %s494 = scalar_lea.vmem [#allocation6], %s493
        %p495 = pneg %p102
        %p496 = pneg %p99
        %s497 = sand.u32 %s31, 1
        %s498 = scalar_lea.sflag [#allocation7], %s497
        %s499 = sand.u32 %s125, 1
        %s500 = smul.addr %s499, 8
        %s501 = scalar_lea.vmem [#allocation8], %s500
        %p502 = pneg %p138
        %p503 = pneg %p135
        %p504 = pneg %p159
        %p505 = pneg %p156
        %p506 = pneg %p180
        %p507 = pneg %p177
        %p508 = pneg %p201
        %p509 = pneg %p198
        %p510 = pneg %p222
        %p511 = pneg %p219
        %p512 = pneg %p243
        %p513 = pneg %p240
        %p514 = pneg %p264
        %p515 = pneg %p261
        %p516 = pneg %p292
        %p517 = pneg %p289
        %s518 = sand.u32 %s279, 1
        %s519 = scalar_lea.sflag [#allocation5], %s518
        %s520 = sand.u32 %s279, 1
        %s521 = smul.addr %s520, 32
        %s522 = scalar_lea.vmem [#allocation14], %s521
        %s523 = smul.u32 4, %s36
        %s524 = smul.u32 %s36, 4
        %s525 = ssub.s32 %s524, 1
        %p526 = scmp.gt.s32.totalorder %s525, 0
        %s527 = scalar_select %p526, %s525, 0
        %s528 = smul.u32 %s36, 4
        %s529 = sadd.s32 %s528, 4
        %p530 = scmp.lt.s32.totalorder %s529, 15
        %s531 = scalar_select %p530, %s529, 15
        %s532 = smul.u32 4, %s36
        %v536 = vld [vmem:[%s457] sm:$0xf]
        %v537 = vld [vmem:[%s457 + $0x4] sm:$0xf]
        %v540 = vunpack.c.l.b16 %v536
        %v541 = vunpack.c.l.b16 %v537
        %v542 = vpack.c.b16 %v541, %v540
        %544 = vst [vmem:[#allocation2] sm:$0xff] %v542
        %v545 = vld [vmem:[%s448] sm:$0xf]
        %v546 = vld [vmem:[%s448 + $0x4] sm:$0xf]
        %v547 = vld [vmem:[%s448 + $0x8] sm:$0xf]
        %v548 = vld [vmem:[%s448 + $0xc] sm:$0xf]
        %v549 = vld [vmem:[%s448 + $0x10] sm:$0xf]
        %v550 = vld [vmem:[%s448 + $0x14] sm:$0xf]
        %v551 = vld [vmem:[%s448 + $0x18] sm:$0xf]
        %v552 = vld [vmem:[%s448 + $0x1c] sm:$0xf]
        %v561 = vunpack.c.l.b16 %v545
        %v562 = vunpack.c.l.b16 %v546
        %v563 = vunpack.c.l.b16 %v547
        %v564 = vunpack.c.l.b16 %v548
        %v565 = vunpack.c.l.b16 %v549
        %v566 = vunpack.c.l.b16 %v550
        %v567 = vunpack.c.l.b16 %v551
        %v568 = vunpack.c.l.b16 %v552
        %v569 = vpack.c.b16 %v562, %v561
        %v570 = vpack.c.b16 %v564, %v563
        %v571 = vpack.c.b16 %v566, %v565
        %v572 = vpack.c.b16 %v568, %v567
        %s577 = scalar_lea.vmem [#allocation2], 8
        %578 = vst [vmem:[%s577] sm:$0xff] %v569
        %579 = vst [vmem:[%s577 + $0x8] sm:$0xff] %v570
        %580 = vst [vmem:[%s577 + $0x10] sm:$0xff] %v571
        %581 = vst [vmem:[%s577 + $0x18] sm:$0xff] %v572
        %v582 = vld [vmem:[%s466] sm:$0xf]
        %v583 = vld [vmem:[%s466 + $0x4] sm:$0xf]
        %v586 = vunpack.c.l.b16 %v582
        %v587 = vunpack.c.l.b16 %v583
        %v588 = vpack.c.b16 %v587, %v586
        %s590 = scalar_lea.vmem [#allocation2], 40
        %591 = vst [vmem:[%s590] sm:$0xff] %v588
        %v592 = vld [vmem:[#allocation2] sm:$0xff]
        %v593 = vld [vmem:[#allocation2 + $0x8] sm:$0xff]
        %v594 = vld [vmem:[#allocation2 + $0x10] sm:$0xff]
        %v595 = vld [vmem:[#allocation2 + $0x18] sm:$0xff]
        %v596 = vld [vmem:[#allocation2 + $0x20] sm:$0xff]
        %v597 = vld [vmem:[#allocation2 + $0x28] sm:$0xff]
        %v598 = vld [vmem:[#allocation9] sm:$0xf]
        %v599 = vld [vmem:[#allocation9 + $0x4] sm:$0xf]
        %v600 = vld [vmem:[#allocation9 + $0x8] sm:$0xf]
        %v601 = vld [vmem:[#allocation9 + $0xc] sm:$0xf]
        %v602 = vld [vmem:[#allocation9 + $0x10] sm:$0xf]
        %v603 = vld [vmem:[#allocation9 + $0x14] sm:$0xf]
        %v604 = vld [vmem:[#allocation9 + $0x18] sm:$0xf]
        %v605 = vld [vmem:[#allocation9 + $0x1c] sm:$0xf]
        %v606 = vld [vmem:[#allocation9 + $0x20] sm:$0xf]
        %v607 = vld [vmem:[#allocation9 + $0x24] sm:$0xf]
        %v608 = vld [vmem:[#allocation9 + $0x28] sm:$0xf]
        %v609 = vld [vmem:[#allocation9 + $0x2c] sm:$0xf]
        %v610 = vld [vmem:[#allocation9 + $0x30] sm:$0xf]
        %v611 = vld [vmem:[#allocation9 + $0x34] sm:$0xf]
        %v612 = vld [vmem:[#allocation9 + $0x38] sm:$0xf]
        %v613 = vld [vmem:[#allocation9 + $0x3c] sm:$0xf]
        %v614 = vld [vmem:[%s4] sm:$0x1]
        %v616 = vlaneseq
        %v617 = vshrl.u32 %v616, 7
        %v618 = vsub.s32 0, %v617
        %v619 = vrot.slane %v614, %v618
        %v637 = vunpack.c.l.b16 %v598
        %v638 = vunpack.c.l.b16 %v599
        %v639 = vunpack.c.l.b16 %v600
        %v640 = vunpack.c.l.b16 %v601
        %v641 = vunpack.c.l.b16 %v602
        %v642 = vunpack.c.l.b16 %v603
        %v643 = vunpack.c.l.b16 %v604
        %v644 = vunpack.c.l.b16 %v605
        %v645 = vunpack.c.l.b16 %v606
        %v646 = vunpack.c.l.b16 %v607
        %v647 = vunpack.c.l.b16 %v608
        %v648 = vunpack.c.l.b16 %v609
        %v649 = vunpack.c.l.b16 %v610
        %v650 = vunpack.c.l.b16 %v611
        %v651 = vunpack.c.l.b16 %v612
        %v652 = vunpack.c.l.b16 %v613
        %v653 = vpack.c.b16 %v638, %v637
        %v654 = vpack.c.b16 %v640, %v639
        %v655 = vpack.c.b16 %v642, %v641
        %v656 = vpack.c.b16 %v644, %v643
        %v657 = vpack.c.b16 %v646, %v645
        %v658 = vpack.c.b16 %v648, %v647
        %v659 = vpack.c.b16 %v650, %v649
        %v660 = vpack.c.b16 %v652, %v651
        %669 = vmatprep.subr.bf16.mxu0 0
        %670 = vmatpush1.bf16.msra.mxu0 %v653
        %671 = vmatprep.subr.bf16.mxu0 0
        %672 = vmatpush1.bf16.msra.mxu0 %v654
        %673 = vmatprep.subr.bf16.mxu0 0
        %674 = vmatpush1.bf16.msra.mxu0 %v655
        %675 = vmatprep.subr.bf16.mxu0 0
        %676 = vmatpush1.bf16.msra.mxu0 %v656
        %677 = vmatprep.subr.bf16.mxu0 0
        %678 = vmatpush1.bf16.msra.mxu0 %v657
        %679 = vmatprep.subr.bf16.mxu0 0
        %680 = vmatpush1.bf16.msra.mxu0 %v658
        %681 = vmatprep.subr.bf16.mxu0 0
        %682 = vmatpush1.bf16.msra.mxu0 %v659
        %683 = vmatprep.subr.bf16.mxu0 0
        %684 = vmatpush1.bf16.msra.mxu0 %v660
        %685 = vmatprep.subr.bf16.mxu0 0
        %686 = vmatpush1.bf16.msra.mxu0 0
        %687 = vmatprep.subr.bf16.mxu0 0
        %688 = vmatpush1.bf16.msra.mxu0 0
        %689 = vmatprep.subr.bf16.mxu0 0
        %690 = vmatpush1.bf16.msra.mxu0 0
        %691 = vmatprep.subr.bf16.mxu0 0
        %692 = vmatpush1.bf16.msra.mxu0 0
        %693 = vmatprep.subr.bf16.mxu0 0
        %694 = vmatpush1.bf16.msra.mxu0 0
        %695 = vmatprep.subr.bf16.mxu0 0
        %696 = vmatpush1.bf16.msra.mxu0 0
        %697 = vmatprep.subr.bf16.mxu0 0
        %698 = vmatpush1.bf16.msra.mxu0 0
        %699 = vmatprep.subr.bf16.mxu0 0
        %700 = vmatpush1.bf16.msra.mxu0 0
        %701 = vmatprep.mubr.bf16.mxu0 0
        %702 = vmatmul.mubr.bf16.gmra.mrb[0].mxu0 %v592
        %v703 = vpop.f32.mrb[0].mxu0
        %v704 = vadd.f32 %v619, %v703
        %v705 = vpop.f32.mrb[0].mxu0
        %v706 = vpop.f32.mrb[0].mxu0
        %v707 = vadd.f32 %v619, %v706
        %v708 = vpop.f32.mrb[0].mxu0
        %709 = vmatprep.mubr.bf16.mxu0 0
        %710 = vmatmul.mubr.bf16.gmra.mrb[0].mxu0 %v593
        %v711 = vpop.f32.mrb[0].mxu0
        %v712 = vadd.f32 %v619, %v711
        %v713 = vpop.f32.mrb[0].mxu0
        %v714 = vpop.f32.mrb[0].mxu0
        %v715 = vadd.f32 %v619, %v714
        %v716 = vpop.f32.mrb[0].mxu0
        %717 = vmatprep.mubr.bf16.mxu0 0
        %718 = vmatmul.mubr.bf16.gmra.mrb[0].mxu0 %v594
        %v719 = vpop.f32.mrb[0].mxu0
        %v720 = vadd.f32 %v619, %v719
        %v721 = vpop.f32.mrb[0].mxu0
        %v722 = vpop.f32.mrb[0].mxu0
        %v723 = vadd.f32 %v619, %v722
        %v724 = vpop.f32.mrb[0].mxu0
        %725 = vmatprep.mubr.bf16.mxu0 0
        %726 = vmatmul.mubr.bf16.gmra.mrb[0].mxu0 %v595
        %v727 = vpop.f32.mrb[0].mxu0
        %v728 = vadd.f32 %v619, %v727
        %v729 = vpop.f32.mrb[0].mxu0
        %v730 = vpop.f32.mrb[0].mxu0
        %v731 = vadd.f32 %v619, %v730
        %v732 = vpop.f32.mrb[0].mxu0
        %733 = vmatprep.mubr.bf16.mxu0 0
        %734 = vmatmul.mubr.bf16.gmra.mrb[0].mxu0 %v596
        %v735 = vpop.f32.mrb[0].mxu0
        %v736 = vadd.f32 %v619, %v735
        %v737 = vpop.f32.mrb[0].mxu0
        %v738 = vpop.f32.mrb[0].mxu0
        %v739 = vadd.f32 %v619, %v738
        %v740 = vpop.f32.mrb[0].mxu0
        %741 = vmatprep.mubr.bf16.mxu0 0
        %742 = vmatmul.mubr.bf16.gmra.mrb[0].mxu0 %v597
        %v743 = vpop.f32.mrb[0].mxu0
        %v744 = vadd.f32 %v619, %v743
        %v745 = vpop.f32.mrb[0].mxu0
        %v746 = vpop.f32.mrb[0].mxu0
        %v747 = vadd.f32 %v619, %v746
        %v748 = vpop.f32.mrb[0].mxu0
        %749 = vdwg.mxu0
        %v750 = vmax.f32 %v704, 0.0
        %v751 = vmax.f32 %v707, 0.0
        %v752 = vmax.f32 %v712, 0.0
        %v753 = vmax.f32 %v715, 0.0
        %v754 = vmax.f32 %v720, 0.0
        %v755 = vmax.f32 %v723, 0.0
        %v756 = vmax.f32 %v728, 0.0
        %v757 = vmax.f32 %v731, 0.0
        %v758 = vmax.f32 %v736, 0.0
        %v759 = vmax.f32 %v739, 0.0
        %v760 = vmax.f32 %v744, 0.0
        %v761 = vmax.f32 %v747, 0.0
        %v762 = vlaneseq
        %v763 = vshrl.u32 %v762, 7
        %v764 = vadd.s32 %v763, 8
        %v765 = vadd.s32 %v763, 16
        %v766 = vadd.s32 %v763, 24
        %v767 = vadd.s32 %v763, 32
        %v768 = vadd.s32 %v763, 40
        %v769 = vadd.s32 %v763, 48
        %v770 = vadd.s32 %v763, 56
        %v771 = vadd.s32 %v763, 64
        %v772 = vadd.s32 %v763, 72
        %v773 = vadd.s32 %v763, 80
        %v774 = vadd.s32 %v763, 88
        %vm775 = vcmp.lt.s32.totalorder %v763, 16
        %vm776 = vcmp.lt.s32.totalorder %v764, 16
        %vm777 = vcmp.lt.s32.totalorder %v765, 16
        %vm778 = vcmp.lt.s32.totalorder %v766, 16
        %vm779 = vcmp.lt.s32.totalorder %v767, 16
        %vm780 = vcmp.lt.s32.totalorder %v768, 16
        %vm781 = vcmp.lt.s32.totalorder %v769, 16
        %vm782 = vcmp.lt.s32.totalorder %v770, 16
        %vm783 = vcmp.lt.s32.totalorder %v771, 16
        %vm784 = vcmp.lt.s32.totalorder %v772, 16
        %vm785 = vcmp.lt.s32.totalorder %v773, 16
        %vm786 = vcmp.lt.s32.totalorder %v774, 16
        %p787 = scmp.eq.s32.totalorder %s36, 0
        %s788 = scalar_select %p787, 1, 0
        %v789 = vstv %s788
        %vm790 = vcmp.eq.s32.totalorder %v789, 1
        %vm791 = vmand %vm775, %vm790
        %vm792 = vmand %vm776, %vm790
        %vm793 = vmand %vm777, %vm790
        %vm794 = vmand %vm778, %vm790
        %vm795 = vmand %vm779, %vm790
        %vm796 = vmand %vm780, %vm790
        %vm797 = vmand %vm781, %vm790
        %vm798 = vmand %vm782, %vm790
        %vm799 = vmand %vm783, %vm790
        %vm800 = vmand %vm784, %vm790
        %vm801 = vmand %vm785, %vm790
        %vm802 = vmand %vm786, %vm790
        %vm803 = vcmp.ge.s32.totalorder %v763, 80
        %vm804 = vcmp.ge.s32.totalorder %v764, 80
        %vm805 = vcmp.ge.s32.totalorder %v765, 80
        %vm806 = vcmp.ge.s32.totalorder %v766, 80
        %vm807 = vcmp.ge.s32.totalorder %v767, 80
        %vm808 = vcmp.ge.s32.totalorder %v768, 80
        %vm809 = vcmp.ge.s32.totalorder %v769, 80
        %vm810 = vcmp.ge.s32.totalorder %v770, 80
        %vm811 = vcmp.ge.s32.totalorder %v771, 80
        %vm812 = vcmp.ge.s32.totalorder %v772, 80
        %vm813 = vcmp.ge.s32.totalorder %v773, 80
        %vm814 = vcmp.ge.s32.totalorder %v774, 80
        %p815 = scmp.eq.s32.totalorder %s36, 3
        %s816 = scalar_select %p815, 1, 0
        %v817 = vstv %s816
        %vm818 = vcmp.eq.s32.totalorder %v817, 1
        %vm819 = vmand %vm803, %vm818
        %vm820 = vmand %vm804, %vm818
        %vm821 = vmand %vm805, %vm818
        %vm822 = vmand %vm806, %vm818
        %vm823 = vmand %vm807, %vm818
        %vm824 = vmand %vm808, %vm818
        %vm825 = vmand %vm809, %vm818
        %vm826 = vmand %vm810, %vm818
        %vm827 = vmand %vm811, %vm818
        %vm828 = vmand %vm812, %vm818
        %vm829 = vmand %vm813, %vm818
        %vm830 = vmand %vm814, %vm818
        %vm831 = vmor %vm791, %vm819
        %vm832 = vmor %vm792, %vm820
        %vm833 = vmor %vm793, %vm821
        %vm834 = vmor %vm794, %vm822
        %vm835 = vmor %vm795, %vm823
        %vm836 = vmor %vm796, %vm824
        %vm837 = vmor %vm797, %vm825
        %vm838 = vmor %vm798, %vm826
        %vm839 = vmor %vm799, %vm827
        %vm840 = vmor %vm800, %vm828
        %vm841 = vmor %vm801, %vm829
        %vm842 = vmor %vm802, %vm830
        %v843 = vsel %vm831, 1, 0
        %v844 = vsel %vm832, 1, 0
        %v845 = vsel %vm833, 1, 0
        %v846 = vsel %vm834, 1, 0
        %v847 = vsel %vm835, 1, 0
        %v848 = vsel %vm836, 1, 0
        %v849 = vsel %vm837, 1, 0
        %v850 = vsel %vm838, 1, 0
        %v851 = vsel %vm839, 1, 0
        %v852 = vsel %vm840, 1, 0
        %v853 = vsel %vm841, 1, 0
        %v854 = vsel %vm842, 1, 0
        %vm855 = vcmp.eq.s32.totalorder %v843, 1
        %vm856 = vcmp.eq.s32.totalorder %v844, 1
        %vm857 = vcmp.eq.s32.totalorder %v845, 1
        %vm858 = vcmp.eq.s32.totalorder %v846, 1
        %vm859 = vcmp.eq.s32.totalorder %v847, 1
        %vm860 = vcmp.eq.s32.totalorder %v848, 1
        %vm861 = vcmp.eq.s32.totalorder %v849, 1
        %vm862 = vcmp.eq.s32.totalorder %v850, 1
        %vm863 = vcmp.eq.s32.totalorder %v851, 1
        %vm864 = vcmp.eq.s32.totalorder %v852, 1
        %vm865 = vcmp.eq.s32.totalorder %v853, 1
        %vm866 = vcmp.eq.s32.totalorder %v854, 1
        %v867 = vsel %vm855, 0.0, %v750
        %v868 = vsel %vm856, 0.0, %v751
        %v869 = vsel %vm857, 0.0, %v752
        %v870 = vsel %vm858, 0.0, %v753
        %v871 = vsel %vm859, 0.0, %v754
        %v872 = vsel %vm860, 0.0, %v755
        %v873 = vsel %vm861, 0.0, %v756
        %v874 = vsel %vm862, 0.0, %v757
        %v875 = vsel %vm863, 0.0, %v758
        %v876 = vsel %vm864, 0.0, %v759
        %v877 = vsel %vm865, 0.0, %v760
        %v878 = vsel %vm866, 0.0, %v761
        %vm879 = vcmp.eq.s32.totalorder %v763, 0
        %vm880 = vcmp.eq.s32.totalorder %v764, 0
        %vm881 = vcmp.eq.s32.totalorder %v763, 15
        %vm882 = vcmp.eq.s32.totalorder %v764, 15
        %v883 = vrot.slane %v867, 7
        %v884 = vrot.slane %v868, 7
        %v885 = vrot.slane %v869, 7
        %v886 = vrot.slane %v870, 7
        %v887 = vrot.slane %v871, 7
        %v888 = vrot.slane %v872, 7
        %v889 = vrot.slane %v873, 7
        %v890 = vrot.slane %v874, 7
        %v891 = vrot.slane %v875, 7
        %v892 = vrot.slane %v876, 7
        %v893 = vrot.slane %v877, 7
        %v894 = vrot.slane %v878, 7
        %vm895 = vcmp.lt.s32.totalorder %v763, 1
        %v896 = vsel %vm895, %v893, %v894
        %v897 = vsel %vm895, %v892, %v893
        %v898 = vsel %vm895, %v891, %v892
        %v899 = vsel %vm895, %v890, %v891
        %v900 = vsel %vm895, %v889, %v890
        %v901 = vsel %vm895, %v888, %v889
        %v902 = vsel %vm895, %v887, %v888
        %v903 = vsel %vm895, %v886, %v887
        %v904 = vsel %vm895, %v885, %v886
        %v905 = vsel %vm895, %v884, %v885
        %v906 = vsel %vm895, %v883, %v884
        %v907 = vsel %vm895, %v894, %v883
        %v908 = vpack.c.bf16 %v896, %v897
        %v909 = vpack.c.bf16 %v906, %v907
        %v910 = vpack.c.bf16 %v904, %v905
        %v911 = vpack.c.bf16 %v902, %v903
        %v912 = vpack.c.bf16 %v900, %v901
        %v913 = vpack.c.bf16 %v898, %v899
        %vm914 = vmpackc.low %vm879, %vm879
        %vm915 = vmpackc.low %vm880, %vm880
        %v916 = vsel %vm914, 65537, 0
        %v917 = vsel %vm915, 65537, 0
        %v918 = vunpack.c.l.b16 %v916
        %v919 = vunpack.c.l.b16 %v917
        %v920 = vpack.c.b16 %v919, %v918
        %vm921 = vcmp.ne.s16.totalorder %v920, 0
        %v922 = vsel %vm921, 0, %v908
        %v923 = vsel %vm921, 0, %v909
        %v924 = vsel %vm921, 0, %v910
        %v925 = vsel %vm921, 0, %v911
        %v926 = vsel %vm921, 0, %v912
        %v927 = vsel %vm921, 0, %v913
        %v928 = vld [vmem:[#allocation11] sm:$0xf]
        %v929 = vld [vmem:[#allocation11 + $0x4] sm:$0xf]
        %v930 = vld [vmem:[#allocation11 + $0x8] sm:$0xf]
        %v931 = vld [vmem:[#allocation11 + $0xc] sm:$0xf]
        %v932 = vld [vmem:[#allocation11 + $0x10] sm:$0xf]
        %v933 = vld [vmem:[#allocation11 + $0x14] sm:$0xf]
        %v934 = vld [vmem:[#allocation11 + $0x18] sm:$0xf]
        %v935 = vld [vmem:[#allocation11 + $0x1c] sm:$0xf]
        %v936 = vld [vmem:[#allocation11 + $0x20] sm:$0xf]
        %v937 = vld [vmem:[#allocation11 + $0x24] sm:$0xf]
        %v938 = vld [vmem:[#allocation11 + $0x28] sm:$0xf]
        %v939 = vld [vmem:[#allocation11 + $0x2c] sm:$0xf]
        %v940 = vld [vmem:[#allocation11 + $0x30] sm:$0xf]
        %v941 = vld [vmem:[#allocation11 + $0x34] sm:$0xf]
        %v942 = vld [vmem:[#allocation11 + $0x38] sm:$0xf]
        %v943 = vld [vmem:[#allocation11 + $0x3c] sm:$0xf]
        %v944 = vpack.c.bf16 %v878, %v877
        %v945 = vpack.c.bf16 %v868, %v867
        %v946 = vpack.c.bf16 %v870, %v869
        %v947 = vpack.c.bf16 %v872, %v871
        %v948 = vpack.c.bf16 %v874, %v873
        %v949 = vpack.c.bf16 %v876, %v875
        %s950 = scalar_lea.vmem [#allocation11], 64
        %v951 = vld [vmem:[%s950] sm:$0xf]
        %v952 = vld [vmem:[%s950 + $0x4] sm:$0xf]
        %v953 = vld [vmem:[%s950 + $0x8] sm:$0xf]
        %v954 = vld [vmem:[%s950 + $0xc] sm:$0xf]
        %v955 = vld [vmem:[%s950 + $0x10] sm:$0xf]
        %v956 = vld [vmem:[%s950 + $0x14] sm:$0xf]
        %v957 = vld [vmem:[%s950 + $0x18] sm:$0xf]
        %v958 = vld [vmem:[%s950 + $0x1c] sm:$0xf]
        %v959 = vld [vmem:[%s950 + $0x20] sm:$0xf]
        %v960 = vld [vmem:[%s950 + $0x24] sm:$0xf]
        %v961 = vld [vmem:[%s950 + $0x28] sm:$0xf]
        %v962 = vld [vmem:[%s950 + $0x2c] sm:$0xf]
        %v963 = vld [vmem:[%s950 + $0x30] sm:$0xf]
        %v964 = vld [vmem:[%s950 + $0x34] sm:$0xf]
        %v965 = vld [vmem:[%s950 + $0x38] sm:$0xf]
        %v966 = vld [vmem:[%s950 + $0x3c] sm:$0xf]
        %v983 = vunpack.c.l.b16 %v951
        %v984 = vunpack.c.l.b16 %v952
        %v985 = vunpack.c.l.b16 %v953
        %v986 = vunpack.c.l.b16 %v954
        %v987 = vunpack.c.l.b16 %v955
        %v988 = vunpack.c.l.b16 %v956
        %v989 = vunpack.c.l.b16 %v957
        %v990 = vunpack.c.l.b16 %v958
        %v991 = vunpack.c.l.b16 %v959
        %v992 = vunpack.c.l.b16 %v960
        %v993 = vunpack.c.l.b16 %v961
        %v994 = vunpack.c.l.b16 %v962
        %v995 = vunpack.c.l.b16 %v963
        %v996 = vunpack.c.l.b16 %v964
        %v997 = vunpack.c.l.b16 %v965
        %v998 = vunpack.c.l.b16 %v966
        %v999 = vpack.c.b16 %v984, %v983
        %v1000 = vpack.c.b16 %v986, %v985
        %v1001 = vpack.c.b16 %v988, %v987
        %v1002 = vpack.c.b16 %v990, %v989
        %v1003 = vpack.c.b16 %v992, %v991
        %v1004 = vpack.c.b16 %v994, %v993
        %v1005 = vpack.c.b16 %v996, %v995
        %v1006 = vpack.c.b16 %v998, %v997
        %1015 = vmatprep.subr.bf16.mxu0 0
        %1016 = vmatpush1.bf16.msra.mxu0 %v999
        %1017 = vmatprep.subr.bf16.mxu0 0
        %1018 = vmatpush1.bf16.msra.mxu0 %v1000
        %1019 = vmatprep.subr.bf16.mxu0 0
        %1020 = vmatpush1.bf16.msra.mxu0 %v1001
        %1021 = vmatprep.subr.bf16.mxu0 0
        %1022 = vmatpush1.bf16.msra.mxu0 %v1002
        %1023 = vmatprep.subr.bf16.mxu0 0
        %1024 = vmatpush1.bf16.msra.mxu0 %v1003
        %1025 = vmatprep.subr.bf16.mxu0 0
        %1026 = vmatpush1.bf16.msra.mxu0 %v1004
        %1027 = vmatprep.subr.bf16.mxu0 0
        %1028 = vmatpush1.bf16.msra.mxu0 %v1005
        %1029 = vmatprep.subr.bf16.mxu0 0
        %1030 = vmatpush1.bf16.msra.mxu0 %v1006
        %1031 = vmatprep.subr.bf16.mxu0 0
        %1032 = vmatpush1.bf16.msra.mxu0 0
        %1033 = vmatprep.subr.bf16.mxu0 0
        %1034 = vmatpush1.bf16.msra.mxu0 0
        %1035 = vmatprep.subr.bf16.mxu0 0
        %1036 = vmatpush1.bf16.msra.mxu0 0
        %1037 = vmatprep.subr.bf16.mxu0 0
        %1038 = vmatpush1.bf16.msra.mxu0 0
        %1039 = vmatprep.subr.bf16.mxu0 0
        %1040 = vmatpush1.bf16.msra.mxu0 0
        %1041 = vmatprep.subr.bf16.mxu0 0
        %1042 = vmatpush1.bf16.msra.mxu0 0
        %1043 = vmatprep.subr.bf16.mxu0 0
        %1044 = vmatpush1.bf16.msra.mxu0 0
        %1045 = vmatprep.subr.bf16.mxu0 0
        %1046 = vmatpush1.bf16.msra.mxu0 0
        %1047 = vmatprep.mubr.bf16.mxu0 0
        %1048 = vmatmul.mubr.bf16.gmra.mrb[0].mxu0 %v944
        %v1049 = vpop.f32.mrb[0].mxu0
        %v1050 = vpop.f32.mrb[0].mxu0
        %v1051 = vpop.f32.mrb[0].mxu0
        %v1052 = vpop.f32.mrb[0].mxu0
        %1053 = vmatprep.mubr.bf16.mxu0 0
        %1054 = vmatmul.mubr.bf16.gmra.mrb[0].mxu0 %v945
        %v1055 = vpop.f32.mrb[0].mxu0
        %v1056 = vadd.f32 0.0, %v1055
        %v1057 = vpop.f32.mrb[0].mxu0
        %v1058 = vpop.f32.mrb[0].mxu0
        %v1059 = vadd.f32 0.0, %v1058
        %v1060 = vpop.f32.mrb[0].mxu0
        %1061 = vmatprep.mubr.bf16.mxu0 0
        %1062 = vmatmul.mubr.bf16.gmra.mrb[0].mxu0 %v946
        %v1063 = vpop.f32.mrb[0].mxu0
        %v1064 = vadd.f32 0.0, %v1063
        %v1065 = vpop.f32.mrb[0].mxu0
        %v1066 = vpop.f32.mrb[0].mxu0
        %v1067 = vadd.f32 0.0, %v1066
        %v1068 = vpop.f32.mrb[0].mxu0
        %1069 = vmatprep.mubr.bf16.mxu0 0
        %1070 = vmatmul.mubr.bf16.gmra.mrb[0].mxu0 %v947
        %v1071 = vpop.f32.mrb[0].mxu0
        %v1072 = vadd.f32 0.0, %v1071
        %v1073 = vpop.f32.mrb[0].mxu0
        %v1074 = vpop.f32.mrb[0].mxu0
        %v1075 = vadd.f32 0.0, %v1074
        %v1076 = vpop.f32.mrb[0].mxu0
        %1077 = vmatprep.mubr.bf16.mxu0 0
        %1078 = vmatmul.mubr.bf16.gmra.mrb[0].mxu0 %v948
        %v1079 = vpop.f32.mrb[0].mxu0
        %v1080 = vadd.f32 0.0, %v1079
        %v1081 = vpop.f32.mrb[0].mxu0
        %v1082 = vpop.f32.mrb[0].mxu0
        %v1083 = vadd.f32 0.0, %v1082
        %v1084 = vpop.f32.mrb[0].mxu0
        %1085 = vmatprep.mubr.bf16.mxu0 0
        %1086 = vmatmul.mubr.bf16.gmra.mrb[0].mxu0 %v949
        %v1087 = vpop.f32.mrb[0].mxu0
        %v1088 = vpop.f32.mrb[0].mxu0
        %v1089 = vpop.f32.mrb[0].mxu0
        %v1090 = vpop.f32.mrb[0].mxu0
        %1091 = vdwg.mxu0
        %v1108 = vunpack.c.l.b16 %v928
        %v1109 = vunpack.c.l.b16 %v929
        %v1110 = vunpack.c.l.b16 %v930
        %v1111 = vunpack.c.l.b16 %v931
        %v1112 = vunpack.c.l.b16 %v932
        %v1113 = vunpack.c.l.b16 %v933
        %v1114 = vunpack.c.l.b16 %v934
        %v1115 = vunpack.c.l.b16 %v935
        %v1116 = vunpack.c.l.b16 %v936
        %v1117 = vunpack.c.l.b16 %v937
        %v1118 = vunpack.c.l.b16 %v938
        %v1119 = vunpack.c.l.b16 %v939
        %v1120 = vunpack.c.l.b16 %v940
        %v1121 = vunpack.c.l.b16 %v941
        %v1122 = vunpack.c.l.b16 %v942
        %v1123 = vunpack.c.l.b16 %v943
        %v1124 = vpack.c.b16 %v1109, %v1108
        %v1125 = vpack.c.b16 %v1111, %v1110
        %v1126 = vpack.c.b16 %v1113, %v1112
        %v1127 = vpack.c.b16 %v1115, %v1114
        %v1128 = vpack.c.b16 %v1117, %v1116
        %v1129 = vpack.c.b16 %v1119, %v1118
        %v1130 = vpack.c.b16 %v1121, %v1120
        %v1131 = vpack.c.b16 %v1123, %v1122
        %1140 = vmatprep.subr.bf16.mxu0 0
        %1141 = vmatpush1.bf16.msra.mxu0 %v1124
        %1142 = vmatprep.subr.bf16.mxu0 0
        %1143 = vmatpush1.bf16.msra.mxu0 %v1125
        %1144 = vmatprep.subr.bf16.mxu0 0
        %1145 = vmatpush1.bf16.msra.mxu0 %v1126
        %1146 = vmatprep.subr.bf16.mxu0 0
        %1147 = vmatpush1.bf16.msra.mxu0 %v1127
        %1148 = vmatprep.subr.bf16.mxu0 0
        %1149 = vmatpush1.bf16.msra.mxu0 %v1128
        %1150 = vmatprep.subr.bf16.mxu0 0
        %1151 = vmatpush1.bf16.msra.mxu0 %v1129
        %1152 = vmatprep.subr.bf16.mxu0 0
        %1153 = vmatpush1.bf16.msra.mxu0 %v1130
        %1154 = vmatprep.subr.bf16.mxu0 0
        %1155 = vmatpush1.bf16.msra.mxu0 %v1131
        %1156 = vmatprep.subr.bf16.mxu0 0
        %1157 = vmatpush1.bf16.msra.mxu0 0
        %1158 = vmatprep.subr.bf16.mxu0 0
        %1159 = vmatpush1.bf16.msra.mxu0 0
        %1160 = vmatprep.subr.bf16.mxu0 0
        %1161 = vmatpush1.bf16.msra.mxu0 0
        %1162 = vmatprep.subr.bf16.mxu0 0
        %1163 = vmatpush1.bf16.msra.mxu0 0
        %1164 = vmatprep.subr.bf16.mxu0 0
        %1165 = vmatpush1.bf16.msra.mxu0 0
        %1166 = vmatprep.subr.bf16.mxu0 0
        %1167 = vmatpush1.bf16.msra.mxu0 0
        %1168 = vmatprep.subr.bf16.mxu0 0
        %1169 = vmatpush1.bf16.msra.mxu0 0
        %1170 = vmatprep.subr.bf16.mxu0 0
        %1171 = vmatpush1.bf16.msra.mxu0 0
        %1172 = vmatprep.mubr.bf16.mxu0 0
        %1173 = vmatmul.mubr.bf16.gmra.mrb[0].mxu0 %v922
        %v1174 = vpop.f32.mrb[0].mxu0
        %v1175 = vpop.f32.mrb[0].mxu0
        %v1176 = vpop.f32.mrb[0].mxu0
        %v1177 = vpop.f32.mrb[0].mxu0
        %1178 = vmatprep.mubr.bf16.mxu0 0
        %1179 = vmatmul.mubr.bf16.gmra.mrb[0].mxu0 %v923
        %v1180 = vpop.f32.mrb[0].mxu0
        %v1181 = vadd.f32 %v1056, %v1180
        %v1182 = vpop.f32.mrb[0].mxu0
        %v1183 = vpop.f32.mrb[0].mxu0
        %v1184 = vadd.f32 %v1059, %v1183
        %v1185 = vpop.f32.mrb[0].mxu0
        %1186 = vmatprep.mubr.bf16.mxu0 0
        %1187 = vmatmul.mubr.bf16.gmra.mrb[0].mxu0 %v924
        %v1188 = vpop.f32.mrb[0].mxu0
        %v1189 = vadd.f32 %v1064, %v1188
        %v1190 = vpop.f32.mrb[0].mxu0
        %v1191 = vpop.f32.mrb[0].mxu0
        %v1192 = vadd.f32 %v1067, %v1191
        %v1193 = vpop.f32.mrb[0].mxu0
        %1194 = vmatprep.mubr.bf16.mxu0 0
        %1195 = vmatmul.mubr.bf16.gmra.mrb[0].mxu0 %v925
        %v1196 = vpop.f32.mrb[0].mxu0
        %v1197 = vadd.f32 %v1072, %v1196
        %v1198 = vpop.f32.mrb[0].mxu0
        %v1199 = vpop.f32.mrb[0].mxu0
        %v1200 = vadd.f32 %v1075, %v1199
        %v1201 = vpop.f32.mrb[0].mxu0
        %1202 = vmatprep.mubr.bf16.mxu0 0
        %1203 = vmatmul.mubr.bf16.gmra.mrb[0].mxu0 %v926
        %v1204 = vpop.f32.mrb[0].mxu0
        %v1205 = vadd.f32 %v1080, %v1204
        %v1206 = vpop.f32.mrb[0].mxu0
        %v1207 = vpop.f32.mrb[0].mxu0
        %v1208 = vadd.f32 %v1083, %v1207
        %v1209 = vpop.f32.mrb[0].mxu0
        %1210 = vmatprep.mubr.bf16.mxu0 0
        %1211 = vmatmul.mubr.bf16.gmra.mrb[0].mxu0 %v927
        %v1212 = vpop.f32.mrb[0].mxu0
        %v1213 = vpop.f32.mrb[0].mxu0
        %v1214 = vpop.f32.mrb[0].mxu0
        %v1215 = vpop.f32.mrb[0].mxu0
        %1216 = vdwg.mxu0
        %v1217 = vrot.slane %v867, 1
        %v1218 = vrot.slane %v868, 1
        %v1219 = vrot.slane %v869, 1
        %v1220 = vrot.slane %v870, 1
        %v1221 = vrot.slane %v871, 1
        %v1222 = vrot.slane %v872, 1
        %v1223 = vrot.slane %v873, 1
        %v1224 = vrot.slane %v874, 1
        %v1225 = vrot.slane %v875, 1
        %v1226 = vrot.slane %v876, 1
        %v1227 = vrot.slane %v877, 1
        %v1228 = vrot.slane %v878, 1
        %vm1229 = vcmp.lt.s32.totalorder %v763, 7
        %v1230 = vsel %vm1229, %v1227, %v1228
        %v1231 = vsel %vm1229, %v1226, %v1227
        %v1232 = vsel %vm1229, %v1225, %v1226
        %v1233 = vsel %vm1229, %v1224, %v1225
        %v1234 = vsel %vm1229, %v1223, %v1224
        %v1235 = vsel %vm1229, %v1222, %v1223
        %v1236 = vsel %vm1229, %v1221, %v1222
        %v1237 = vsel %vm1229, %v1220, %v1221
        %v1238 = vsel %vm1229, %v1219, %v1220
        %v1239 = vsel %vm1229, %v1218, %v1219
        %v1240 = vsel %vm1229, %v1217, %v1218
        %v1241 = vsel %vm1229, %v1228, %v1217
        %v1242 = vpack.c.bf16 %v1241, %v1230
        %v1243 = vpack.c.bf16 %v1239, %v1240
        %v1244 = vpack.c.bf16 %v1237, %v1238
        %v1245 = vpack.c.bf16 %v1235, %v1236
        %v1246 = vpack.c.bf16 %v1233, %v1234
        %v1247 = vpack.c.bf16 %v1231, %v1232
        %vm1248 = vmpackc.low %vm881, %vm881
        %vm1249 = vmpackc.low %vm882, %vm882
        %v1250 = vsel %vm1248, 65537, 0
        %v1251 = vsel %vm1249, 65537, 0
        %v1252 = vunpack.c.l.b16 %v1250
        %v1253 = vunpack.c.l.b16 %v1251
        %v1254 = vpack.c.b16 %v1253, %v1252
        %vm1255 = vcmp.ne.s16.totalorder %v1254, 0
        %v1256 = vsel %vm1255, 0, %v1242
        %v1257 = vsel %vm1255, 0, %v1243
        %v1258 = vsel %vm1255, 0, %v1244
        %v1259 = vsel %vm1255, 0, %v1245
        %v1260 = vsel %vm1255, 0, %v1246
        %v1261 = vsel %vm1255, 0, %v1247
        %s1262 = scalar_lea.vmem [#allocation11], 128
        %v1263 = vld [vmem:[%s1262] sm:$0xf]
        %v1264 = vld [vmem:[%s1262 + $0x4] sm:$0xf]
        %v1265 = vld [vmem:[%s1262 + $0x8] sm:$0xf]
        %v1266 = vld [vmem:[%s1262 + $0xc] sm:$0xf]
        %v1267 = vld [vmem:[%s1262 + $0x10] sm:$0xf]
        %v1268 = vld [vmem:[%s1262 + $0x14] sm:$0xf]
        %v1269 = vld [vmem:[%s1262 + $0x18] sm:$0xf]
        %v1270 = vld [vmem:[%s1262 + $0x1c] sm:$0xf]
        %v1271 = vld [vmem:[%s1262 + $0x20] sm:$0xf]
        %v1272 = vld [vmem:[%s1262 + $0x24] sm:$0xf]
        %v1273 = vld [vmem:[%s1262 + $0x28] sm:$0xf]
        %v1274 = vld [vmem:[%s1262 + $0x2c] sm:$0xf]
        %v1275 = vld [vmem:[%s1262 + $0x30] sm:$0xf]
        %v1276 = vld [vmem:[%s1262 + $0x34] sm:$0xf]
        %v1277 = vld [vmem:[%s1262 + $0x38] sm:$0xf]
        %v1278 = vld [vmem:[%s1262 + $0x3c] sm:$0xf]
        %v1295 = vunpack.c.l.b16 %v1263
        %v1296 = vunpack.c.l.b16 %v1264
        %v1297 = vunpack.c.l.b16 %v1265
        %v1298 = vunpack.c.l.b16 %v1266
        %v1299 = vunpack.c.l.b16 %v1267
        %v1300 = vunpack.c.l.b16 %v1268
        %v1301 = vunpack.c.l.b16 %v1269
        %v1302 = vunpack.c.l.b16 %v1270
        %v1303 = vunpack.c.l.b16 %v1271
        %v1304 = vunpack.c.l.b16 %v1272
        %v1305 = vunpack.c.l.b16 %v1273
        %v1306 = vunpack.c.l.b16 %v1274
        %v1307 = vunpack.c.l.b16 %v1275
        %v1308 = vunpack.c.l.b16 %v1276
        %v1309 = vunpack.c.l.b16 %v1277
        %v1310 = vunpack.c.l.b16 %v1278
        %v1311 = vpack.c.b16 %v1296, %v1295
        %v1312 = vpack.c.b16 %v1298, %v1297
        %v1313 = vpack.c.b16 %v1300, %v1299
        %v1314 = vpack.c.b16 %v1302, %v1301
        %v1315 = vpack.c.b16 %v1304, %v1303
        %v1316 = vpack.c.b16 %v1306, %v1305
        %v1317 = vpack.c.b16 %v1308, %v1307
        %v1318 = vpack.c.b16 %v1310, %v1309
        %1327 = vmatprep.subr.bf16.mxu0 0
        %1328 = vmatpush1.bf16.msra.mxu0 %v1311
        %1329 = vmatprep.subr.bf16.mxu0 0
        %1330 = vmatpush1.bf16.msra.mxu0 %v1312
        %1331 = vmatprep.subr.bf16.mxu0 0
        %1332 = vmatpush1.bf16.msra.mxu0 %v1313
        %1333 = vmatprep.subr.bf16.mxu0 0
        %1334 = vmatpush1.bf16.msra.mxu0 %v1314
        %1335 = vmatprep.subr.bf16.mxu0 0
        %1336 = vmatpush1.bf16.msra.mxu0 %v1315
        %1337 = vmatprep.subr.bf16.mxu0 0
        %1338 = vmatpush1.bf16.msra.mxu0 %v1316
        %1339 = vmatprep.subr.bf16.mxu0 0
        %1340 = vmatpush1.bf16.msra.mxu0 %v1317
        %1341 = vmatprep.subr.bf16.mxu0 0
        %1342 = vmatpush1.bf16.msra.mxu0 %v1318
        %1343 = vmatprep.subr.bf16.mxu0 0
        %1344 = vmatpush1.bf16.msra.mxu0 0
        %1345 = vmatprep.subr.bf16.mxu0 0
        %1346 = vmatpush1.bf16.msra.mxu0 0
        %1347 = vmatprep.subr.bf16.mxu0 0
        %1348 = vmatpush1.bf16.msra.mxu0 0
        %1349 = vmatprep.subr.bf16.mxu0 0
        %1350 = vmatpush1.bf16.msra.mxu0 0
        %1351 = vmatprep.subr.bf16.mxu0 0
        %1352 = vmatpush1.bf16.msra.mxu0 0
        %1353 = vmatprep.subr.bf16.mxu0 0
        %1354 = vmatpush1.bf16.msra.mxu0 0
        %1355 = vmatprep.subr.bf16.mxu0 0
        %1356 = vmatpush1.bf16.msra.mxu0 0
        %1357 = vmatprep.subr.bf16.mxu0 0
        %1358 = vmatpush1.bf16.msra.mxu0 0
        %1359 = vmatprep.mubr.bf16.mxu0 0
        %1360 = vmatmul.mubr.bf16.gmra.mrb[0].mxu0 %v1256
        %v1361 = vpop.f32.mrb[0].mxu0
        %v1362 = vpop.f32.mrb[0].mxu0
        %v1363 = vpop.f32.mrb[0].mxu0
        %v1364 = vpop.f32.mrb[0].mxu0
        %1365 = vmatprep.mubr.bf16.mxu0 0
        %1366 = vmatmul.mubr.bf16.gmra.mrb[0].mxu0 %v1257
        %v1367 = vpop.f32.mrb[0].mxu0
        %v1368 = vadd.f32 0.0, %v1367
        %v1369 = vpop.f32.mrb[0].mxu0
        %v1370 = vpop.f32.mrb[0].mxu0
        %v1371 = vadd.f32 0.0, %v1370
        %v1372 = vpop.f32.mrb[0].mxu0
        %1373 = vmatprep.mubr.bf16.mxu0 0
        %1374 = vmatmul.mubr.bf16.gmra.mrb[0].mxu0 %v1258
        %v1375 = vpop.f32.mrb[0].mxu0
        %v1376 = vadd.f32 0.0, %v1375
        %v1377 = vpop.f32.mrb[0].mxu0
        %v1378 = vpop.f32.mrb[0].mxu0
        %v1379 = vadd.f32 0.0, %v1378
        %v1380 = vpop.f32.mrb[0].mxu0
        %1381 = vmatprep.mubr.bf16.mxu0 0
        %1382 = vmatmul.mubr.bf16.gmra.mrb[0].mxu0 %v1259
        %v1383 = vpop.f32.mrb[0].mxu0
        %v1384 = vadd.f32 0.0, %v1383
        %v1385 = vpop.f32.mrb[0].mxu0
        %v1386 = vpop.f32.mrb[0].mxu0
        %v1387 = vadd.f32 0.0, %v1386
        %v1388 = vpop.f32.mrb[0].mxu0
        %1389 = vmatprep.mubr.bf16.mxu0 0
        %1390 = vmatmul.mubr.bf16.gmra.mrb[0].mxu0 %v1260
        %v1391 = vpop.f32.mrb[0].mxu0
        %v1392 = vadd.f32 0.0, %v1391
        %v1393 = vpop.f32.mrb[0].mxu0
        %v1394 = vpop.f32.mrb[0].mxu0
        %v1395 = vadd.f32 0.0, %v1394
        %v1396 = vpop.f32.mrb[0].mxu0
        %1397 = vmatprep.mubr.bf16.mxu0 0
        %1398 = vmatmul.mubr.bf16.gmra.mrb[0].mxu0 %v1261
        %v1399 = vpop.f32.mrb[0].mxu0
        %v1400 = vpop.f32.mrb[0].mxu0
        %v1401 = vpop.f32.mrb[0].mxu0
        %v1402 = vpop.f32.mrb[0].mxu0
        %1403 = vdwg.mxu0
        %v1404 = vadd.f32 %v1181, %v1368
        %v1405 = vadd.f32 %v1184, %v1371
        %v1406 = vadd.f32 %v1189, %v1376
        %v1407 = vadd.f32 %v1192, %v1379
        %v1408 = vadd.f32 %v1197, %v1384
        %v1409 = vadd.f32 %v1200, %v1387
        %v1410 = vadd.f32 %v1205, %v1392
        %v1411 = vadd.f32 %v1208, %v1395
        %s1412 = scalar_lea.vmem [#allocation11], 192
        %v1413 = vld [vmem:[%s1412] sm:$0xf]
        %v1414 = vld [vmem:[%s1412 + $0x4] sm:$0xf]
        %v1415 = vld [vmem:[%s1412 + $0x8] sm:$0xf]
        %v1416 = vld [vmem:[%s1412 + $0xc] sm:$0xf]
        %v1417 = vld [vmem:[%s1412 + $0x10] sm:$0xf]
        %v1418 = vld [vmem:[%s1412 + $0x14] sm:$0xf]
        %v1419 = vld [vmem:[%s1412 + $0x18] sm:$0xf]
        %v1420 = vld [vmem:[%s1412 + $0x1c] sm:$0xf]
        %v1421 = vld [vmem:[%s1412 + $0x20] sm:$0xf]
        %v1422 = vld [vmem:[%s1412 + $0x24] sm:$0xf]
        %v1423 = vld [vmem:[%s1412 + $0x28] sm:$0xf]
        %v1424 = vld [vmem:[%s1412 + $0x2c] sm:$0xf]
        %v1425 = vld [vmem:[%s1412 + $0x30] sm:$0xf]
        %v1426 = vld [vmem:[%s1412 + $0x34] sm:$0xf]
        %v1427 = vld [vmem:[%s1412 + $0x38] sm:$0xf]
        %v1428 = vld [vmem:[%s1412 + $0x3c] sm:$0xf]
        %v1445 = vunpack.c.l.b16 %v1413
        %v1446 = vunpack.c.l.b16 %v1414
        %v1447 = vunpack.c.l.b16 %v1415
        %v1448 = vunpack.c.l.b16 %v1416
        %v1449 = vunpack.c.l.b16 %v1417
        %v1450 = vunpack.c.l.b16 %v1418
        %v1451 = vunpack.c.l.b16 %v1419
        %v1452 = vunpack.c.l.b16 %v1420
        %v1453 = vunpack.c.l.b16 %v1421
        %v1454 = vunpack.c.l.b16 %v1422
        %v1455 = vunpack.c.l.b16 %v1423
        %v1456 = vunpack.c.l.b16 %v1424
        %v1457 = vunpack.c.l.b16 %v1425
        %v1458 = vunpack.c.l.b16 %v1426
        %v1459 = vunpack.c.l.b16 %v1427
        %v1460 = vunpack.c.l.b16 %v1428
        %v1461 = vpack.c.b16 %v1446, %v1445
        %v1462 = vpack.c.b16 %v1448, %v1447
        %v1463 = vpack.c.b16 %v1450, %v1449
        %v1464 = vpack.c.b16 %v1452, %v1451
        %v1465 = vpack.c.b16 %v1454, %v1453
        %v1466 = vpack.c.b16 %v1456, %v1455
        %v1467 = vpack.c.b16 %v1458, %v1457
        %v1468 = vpack.c.b16 %v1460, %v1459
        %1477 = vmatprep.subr.bf16.mxu0 0
        %1478 = vmatpush1.bf16.msra.mxu0 %v1461
        %1479 = vmatprep.subr.bf16.mxu0 0
        %1480 = vmatpush1.bf16.msra.mxu0 %v1462
        %1481 = vmatprep.subr.bf16.mxu0 0
        %1482 = vmatpush1.bf16.msra.mxu0 %v1463
        %1483 = vmatprep.subr.bf16.mxu0 0
        %1484 = vmatpush1.bf16.msra.mxu0 %v1464
        %1485 = vmatprep.subr.bf16.mxu0 0
        %1486 = vmatpush1.bf16.msra.mxu0 %v1465
        %1487 = vmatprep.subr.bf16.mxu0 0
        %1488 = vmatpush1.bf16.msra.mxu0 %v1466
        %1489 = vmatprep.subr.bf16.mxu0 0
        %1490 = vmatpush1.bf16.msra.mxu0 %v1467
        %1491 = vmatprep.subr.bf16.mxu0 0
        %1492 = vmatpush1.bf16.msra.mxu0 %v1468
        %1493 = vmatprep.subr.bf16.mxu0 0
        %1494 = vmatpush1.bf16.msra.mxu0 0
        %1495 = vmatprep.subr.bf16.mxu0 0
        %1496 = vmatpush1.bf16.msra.mxu0 0
        %1497 = vmatprep.subr.bf16.mxu0 0
        %1498 = vmatpush1.bf16.msra.mxu0 0
        %1499 = vmatprep.subr.bf16.mxu0 0
        %1500 = vmatpush1.bf16.msra.mxu0 0
        %1501 = vmatprep.subr.bf16.mxu0 0
        %1502 = vmatpush1.bf16.msra.mxu0 0
        %1503 = vmatprep.subr.bf16.mxu0 0
        %1504 = vmatpush1.bf16.msra.mxu0 0
        %1505 = vmatprep.subr.bf16.mxu0 0
        %1506 = vmatpush1.bf16.msra.mxu0 0
        %1507 = vmatprep.subr.bf16.mxu0 0
        %1508 = vmatpush1.bf16.msra.mxu0 0
        %1509 = vmatprep.mubr.bf16.mxu0 0
        %1510 = vmatmul.mubr.bf16.gmra.mrb[0].mxu0 %v923
        %v1511 = vpop.f32.mrb[0].mxu0
        %v1512 = vpop.f32.mrb[0].mxu0
        %v1513 = vpop.f32.mrb[0].mxu0
        %v1514 = vpop.f32.mrb[0].mxu0
        %1515 = vmatprep.mubr.bf16.mxu0 0
        %1516 = vmatmul.mubr.bf16.gmra.mrb[0].mxu0 %v924
        %v1517 = vpop.f32.mrb[0].mxu0
        %v1518 = vadd.f32 0.0, %v1517
        %v1519 = vpop.f32.mrb[0].mxu0
        %v1520 = vpop.f32.mrb[0].mxu0
        %v1521 = vadd.f32 0.0, %v1520
        %v1522 = vpop.f32.mrb[0].mxu0
        %1523 = vmatprep.mubr.bf16.mxu0 0
        %1524 = vmatmul.mubr.bf16.gmra.mrb[0].mxu0 %v925
        %v1525 = vpop.f32.mrb[0].mxu0
        %v1526 = vadd.f32 0.0, %v1525
        %v1527 = vpop.f32.mrb[0].mxu0
        %v1528 = vpop.f32.mrb[0].mxu0
        %v1529 = vadd.f32 0.0, %v1528
        %v1530 = vpop.f32.mrb[0].mxu0
        %1531 = vmatprep.mubr.bf16.mxu0 0
        %1532 = vmatmul.mubr.bf16.gmra.mrb[0].mxu0 %v926
        %v1533 = vpop.f32.mrb[0].mxu0
        %v1534 = vadd.f32 0.0, %v1533
        %v1535 = vpop.f32.mrb[0].mxu0
        %v1536 = vpop.f32.mrb[0].mxu0
        %v1537 = vadd.f32 0.0, %v1536
        %v1538 = vpop.f32.mrb[0].mxu0
        %1539 = vmatprep.mubr.bf16.mxu0 0
        %1540 = vmatmul.mubr.bf16.gmra.mrb[0].mxu0 %v927
        %v1541 = vpop.f32.mrb[0].mxu0
        %v1542 = vadd.f32 0.0, %v1541
        %v1543 = vpop.f32.mrb[0].mxu0
        %v1544 = vpop.f32.mrb[0].mxu0
        %v1545 = vadd.f32 0.0, %v1544
        %v1546 = vpop.f32.mrb[0].mxu0
        %1547 = vmatprep.mubr.bf16.mxu0 0
        %1548 = vmatmul.mubr.bf16.gmra.mrb[0].mxu0 %v922
        %v1549 = vpop.f32.mrb[0].mxu0
        %v1550 = vpop.f32.mrb[0].mxu0
        %v1551 = vpop.f32.mrb[0].mxu0
        %v1552 = vpop.f32.mrb[0].mxu0
        %1553 = vdwg.mxu0
        %v1554 = vadd.f32 %v1404, %v1518
        %v1555 = vadd.f32 %v1405, %v1521
        %v1556 = vadd.f32 %v1406, %v1526
        %v1557 = vadd.f32 %v1407, %v1529
        %v1558 = vadd.f32 %v1408, %v1534
        %v1559 = vadd.f32 %v1409, %v1537
        %v1560 = vadd.f32 %v1410, %v1542
        %v1561 = vadd.f32 %v1411, %v1545
        %s1562 = scalar_lea.vmem [#allocation11], 256
        %v1563 = vld [vmem:[%s1562] sm:$0xf]
        %v1564 = vld [vmem:[%s1562 + $0x4] sm:$0xf]
        %v1565 = vld [vmem:[%s1562 + $0x8] sm:$0xf]
        %v1566 = vld [vmem:[%s1562 + $0xc] sm:$0xf]
        %v1567 = vld [vmem:[%s1562 + $0x10] sm:$0xf]
        %v1568 = vld [vmem:[%s1562 + $0x14] sm:$0xf]
        %v1569 = vld [vmem:[%s1562 + $0x18] sm:$0xf]
        %v1570 = vld [vmem:[%s1562 + $0x1c] sm:$0xf]
        %v1571 = vld [vmem:[%s1562 + $0x20] sm:$0xf]
        %v1572 = vld [vmem:[%s1562 + $0x24] sm:$0xf]
        %v1573 = vld [vmem:[%s1562 + $0x28] sm:$0xf]
        %v1574 = vld [vmem:[%s1562 + $0x2c] sm:$0xf]
        %v1575 = vld [vmem:[%s1562 + $0x30] sm:$0xf]
        %v1576 = vld [vmem:[%s1562 + $0x34] sm:$0xf]
        %v1577 = vld [vmem:[%s1562 + $0x38] sm:$0xf]
        %v1578 = vld [vmem:[%s1562 + $0x3c] sm:$0xf]
        %v1595 = vunpack.c.l.b16 %v1563
        %v1596 = vunpack.c.l.b16 %v1564
        %v1597 = vunpack.c.l.b16 %v1565
        %v1598 = vunpack.c.l.b16 %v1566
        %v1599 = vunpack.c.l.b16 %v1567
        %v1600 = vunpack.c.l.b16 %v1568
        %v1601 = vunpack.c.l.b16 %v1569
        %v1602 = vunpack.c.l.b16 %v1570
        %v1603 = vunpack.c.l.b16 %v1571
        %v1604 = vunpack.c.l.b16 %v1572
        %v1605 = vunpack.c.l.b16 %v1573
        %v1606 = vunpack.c.l.b16 %v1574
        %v1607 = vunpack.c.l.b16 %v1575
        %v1608 = vunpack.c.l.b16 %v1576
        %v1609 = vunpack.c.l.b16 %v1577
        %v1610 = vunpack.c.l.b16 %v1578
        %v1611 = vpack.c.b16 %v1596, %v1595
        %v1612 = vpack.c.b16 %v1598, %v1597
        %v1613 = vpack.c.b16 %v1600, %v1599
        %v1614 = vpack.c.b16 %v1602, %v1601
        %v1615 = vpack.c.b16 %v1604, %v1603
        %v1616 = vpack.c.b16 %v1606, %v1605
        %v1617 = vpack.c.b16 %v1608, %v1607
        %v1618 = vpack.c.b16 %v1610, %v1609
        %1627 = vmatprep.subr.bf16.mxu0 0
        %1628 = vmatpush1.bf16.msra.mxu0 %v1611
        %1629 = vmatprep.subr.bf16.mxu0 0
        %1630 = vmatpush1.bf16.msra.mxu0 %v1612
        %1631 = vmatprep.subr.bf16.mxu0 0
        %1632 = vmatpush1.bf16.msra.mxu0 %v1613
        %1633 = vmatprep.subr.bf16.mxu0 0
        %1634 = vmatpush1.bf16.msra.mxu0 %v1614
        %1635 = vmatprep.subr.bf16.mxu0 0
        %1636 = vmatpush1.bf16.msra.mxu0 %v1615
        %1637 = vmatprep.subr.bf16.mxu0 0
        %1638 = vmatpush1.bf16.msra.mxu0 %v1616
        %1639 = vmatprep.subr.bf16.mxu0 0
        %1640 = vmatpush1.bf16.msra.mxu0 %v1617
        %1641 = vmatprep.subr.bf16.mxu0 0
        %1642 = vmatpush1.bf16.msra.mxu0 %v1618
        %1643 = vmatprep.subr.bf16.mxu0 0
        %1644 = vmatpush1.bf16.msra.mxu0 0
        %1645 = vmatprep.subr.bf16.mxu0 0
        %1646 = vmatpush1.bf16.msra.mxu0 0
        %1647 = vmatprep.subr.bf16.mxu0 0
        %1648 = vmatpush1.bf16.msra.mxu0 0
        %1649 = vmatprep.subr.bf16.mxu0 0
        %1650 = vmatpush1.bf16.msra.mxu0 0
        %1651 = vmatprep.subr.bf16.mxu0 0
        %1652 = vmatpush1.bf16.msra.mxu0 0
        %1653 = vmatprep.subr.bf16.mxu0 0
        %1654 = vmatpush1.bf16.msra.mxu0 0
        %1655 = vmatprep.subr.bf16.mxu0 0
        %1656 = vmatpush1.bf16.msra.mxu0 0
        %1657 = vmatprep.subr.bf16.mxu0 0
        %1658 = vmatpush1.bf16.msra.mxu0 0
        %1659 = vmatprep.mubr.bf16.mxu0 0
        %1660 = vmatmul.mubr.bf16.gmra.mrb[0].mxu0 %v945
        %v1661 = vpop.f32.mrb[0].mxu0
        %v1662 = vpop.f32.mrb[0].mxu0
        %v1663 = vpop.f32.mrb[0].mxu0
        %v1664 = vpop.f32.mrb[0].mxu0
        %1665 = vmatprep.mubr.bf16.mxu0 0
        %1666 = vmatmul.mubr.bf16.gmra.mrb[0].mxu0 %v946
        %v1667 = vpop.f32.mrb[0].mxu0
        %v1668 = vadd.f32 0.0, %v1667
        %v1669 = vpop.f32.mrb[0].mxu0
        %v1670 = vpop.f32.mrb[0].mxu0
        %v1671 = vadd.f32 0.0, %v1670
        %v1672 = vpop.f32.mrb[0].mxu0
        %1673 = vmatprep.mubr.bf16.mxu0 0
        %1674 = vmatmul.mubr.bf16.gmra.mrb[0].mxu0 %v947
        %v1675 = vpop.f32.mrb[0].mxu0
        %v1676 = vadd.f32 0.0, %v1675
        %v1677 = vpop.f32.mrb[0].mxu0
        %v1678 = vpop.f32.mrb[0].mxu0
        %v1679 = vadd.f32 0.0, %v1678
        %v1680 = vpop.f32.mrb[0].mxu0
        %1681 = vmatprep.mubr.bf16.mxu0 0
        %1682 = vmatmul.mubr.bf16.gmra.mrb[0].mxu0 %v948
        %v1683 = vpop.f32.mrb[0].mxu0
        %v1684 = vadd.f32 0.0, %v1683
        %v1685 = vpop.f32.mrb[0].mxu0
        %v1686 = vpop.f32.mrb[0].mxu0
        %v1687 = vadd.f32 0.0, %v1686
        %v1688 = vpop.f32.mrb[0].mxu0
        %1689 = vmatprep.mubr.bf16.mxu0 0
        %1690 = vmatmul.mubr.bf16.gmra.mrb[0].mxu0 %v949
        %v1691 = vpop.f32.mrb[0].mxu0
        %v1692 = vadd.f32 0.0, %v1691
        %v1693 = vpop.f32.mrb[0].mxu0
        %v1694 = vpop.f32.mrb[0].mxu0
        %v1695 = vadd.f32 0.0, %v1694
        %v1696 = vpop.f32.mrb[0].mxu0
        %1697 = vmatprep.mubr.bf16.mxu0 0
        %1698 = vmatmul.mubr.bf16.gmra.mrb[0].mxu0 %v944
        %v1699 = vpop.f32.mrb[0].mxu0
        %v1700 = vpop.f32.mrb[0].mxu0
        %v1701 = vpop.f32.mrb[0].mxu0
        %v1702 = vpop.f32.mrb[0].mxu0
        %1703 = vdwg.mxu0
        %v1704 = vadd.f32 %v1554, %v1668
        %v1705 = vadd.f32 %v1555, %v1671
        %v1706 = vadd.f32 %v1556, %v1676
        %v1707 = vadd.f32 %v1557, %v1679
        %v1708 = vadd.f32 %v1558, %v1684
        %v1709 = vadd.f32 %v1559, %v1687
        %v1710 = vadd.f32 %v1560, %v1692
        %v1711 = vadd.f32 %v1561, %v1695
        %s1712 = scalar_lea.vmem [#allocation11], 320
        %v1713 = vld [vmem:[%s1712] sm:$0xf]
        %v1714 = vld [vmem:[%s1712 + $0x4] sm:$0xf]
        %v1715 = vld [vmem:[%s1712 + $0x8] sm:$0xf]
        %v1716 = vld [vmem:[%s1712 + $0xc] sm:$0xf]
        %v1717 = vld [vmem:[%s1712 + $0x10] sm:$0xf]
        %v1718 = vld [vmem:[%s1712 + $0x14] sm:$0xf]
        %v1719 = vld [vmem:[%s1712 + $0x18] sm:$0xf]
        %v1720 = vld [vmem:[%s1712 + $0x1c] sm:$0xf]
        %v1721 = vld [vmem:[%s1712 + $0x20] sm:$0xf]
        %v1722 = vld [vmem:[%s1712 + $0x24] sm:$0xf]
        %v1723 = vld [vmem:[%s1712 + $0x28] sm:$0xf]
        %v1724 = vld [vmem:[%s1712 + $0x2c] sm:$0xf]
        %v1725 = vld [vmem:[%s1712 + $0x30] sm:$0xf]
        %v1726 = vld [vmem:[%s1712 + $0x34] sm:$0xf]
        %v1727 = vld [vmem:[%s1712 + $0x38] sm:$0xf]
        %v1728 = vld [vmem:[%s1712 + $0x3c] sm:$0xf]
        %v1745 = vunpack.c.l.b16 %v1713
        %v1746 = vunpack.c.l.b16 %v1714
        %v1747 = vunpack.c.l.b16 %v1715
        %v1748 = vunpack.c.l.b16 %v1716
        %v1749 = vunpack.c.l.b16 %v1717
        %v1750 = vunpack.c.l.b16 %v1718
        %v1751 = vunpack.c.l.b16 %v1719
        %v1752 = vunpack.c.l.b16 %v1720
        %v1753 = vunpack.c.l.b16 %v1721
        %v1754 = vunpack.c.l.b16 %v1722
        %v1755 = vunpack.c.l.b16 %v1723
        %v1756 = vunpack.c.l.b16 %v1724
        %v1757 = vunpack.c.l.b16 %v1725
        %v1758 = vunpack.c.l.b16 %v1726
        %v1759 = vunpack.c.l.b16 %v1727
        %v1760 = vunpack.c.l.b16 %v1728
        %v1761 = vpack.c.b16 %v1746, %v1745
        %v1762 = vpack.c.b16 %v1748, %v1747
        %v1763 = vpack.c.b16 %v1750, %v1749
        %v1764 = vpack.c.b16 %v1752, %v1751
        %v1765 = vpack.c.b16 %v1754, %v1753
        %v1766 = vpack.c.b16 %v1756, %v1755
        %v1767 = vpack.c.b16 %v1758, %v1757
        %v1768 = vpack.c.b16 %v1760, %v1759
        %1777 = vmatprep.subr.bf16.mxu0 0
        %1778 = vmatpush1.bf16.msra.mxu0 %v1761
        %1779 = vmatprep.subr.bf16.mxu0 0
        %1780 = vmatpush1.bf16.msra.mxu0 %v1762
        %1781 = vmatprep.subr.bf16.mxu0 0
        %1782 = vmatpush1.bf16.msra.mxu0 %v1763
        %1783 = vmatprep.subr.bf16.mxu0 0
        %1784 = vmatpush1.bf16.msra.mxu0 %v1764
        %1785 = vmatprep.subr.bf16.mxu0 0
        %1786 = vmatpush1.bf16.msra.mxu0 %v1765
        %1787 = vmatprep.subr.bf16.mxu0 0
        %1788 = vmatpush1.bf16.msra.mxu0 %v1766
        %1789 = vmatprep.subr.bf16.mxu0 0
        %1790 = vmatpush1.bf16.msra.mxu0 %v1767
        %1791 = vmatprep.subr.bf16.mxu0 0
        %1792 = vmatpush1.bf16.msra.mxu0 %v1768
        %1793 = vmatprep.subr.bf16.mxu0 0
        %1794 = vmatpush1.bf16.msra.mxu0 0
        %1795 = vmatprep.subr.bf16.mxu0 0
        %1796 = vmatpush1.bf16.msra.mxu0 0
        %1797 = vmatprep.subr.bf16.mxu0 0
        %1798 = vmatpush1.bf16.msra.mxu0 0
        %1799 = vmatprep.subr.bf16.mxu0 0
        %1800 = vmatpush1.bf16.msra.mxu0 0
        %1801 = vmatprep.subr.bf16.mxu0 0
        %1802 = vmatpush1.bf16.msra.mxu0 0
        %1803 = vmatprep.subr.bf16.mxu0 0
        %1804 = vmatpush1.bf16.msra.mxu0 0
        %1805 = vmatprep.subr.bf16.mxu0 0
        %1806 = vmatpush1.bf16.msra.mxu0 0
        %1807 = vmatprep.subr.bf16.mxu0 0
        %1808 = vmatpush1.bf16.msra.mxu0 0
        %1809 = vmatprep.mubr.bf16.mxu0 0
        %1810 = vmatmul.mubr.bf16.gmra.mrb[0].mxu0 %v1257
        %v1811 = vpop.f32.mrb[0].mxu0
        %v1812 = vpop.f32.mrb[0].mxu0
        %v1813 = vpop.f32.mrb[0].mxu0
        %v1814 = vpop.f32.mrb[0].mxu0
        %1815 = vmatprep.mubr.bf16.mxu0 0
        %1816 = vmatmul.mubr.bf16.gmra.mrb[0].mxu0 %v1258
        %v1817 = vpop.f32.mrb[0].mxu0
        %v1818 = vadd.f32 0.0, %v1817
        %v1819 = vpop.f32.mrb[0].mxu0
        %v1820 = vpop.f32.mrb[0].mxu0
        %v1821 = vadd.f32 0.0, %v1820
        %v1822 = vpop.f32.mrb[0].mxu0
        %1823 = vmatprep.mubr.bf16.mxu0 0
        %1824 = vmatmul.mubr.bf16.gmra.mrb[0].mxu0 %v1259
        %v1825 = vpop.f32.mrb[0].mxu0
        %v1826 = vadd.f32 0.0, %v1825
        %v1827 = vpop.f32.mrb[0].mxu0
        %v1828 = vpop.f32.mrb[0].mxu0
        %v1829 = vadd.f32 0.0, %v1828
        %v1830 = vpop.f32.mrb[0].mxu0
        %1831 = vmatprep.mubr.bf16.mxu0 0
        %1832 = vmatmul.mubr.bf16.gmra.mrb[0].mxu0 %v1260
        %v1833 = vpop.f32.mrb[0].mxu0
        %v1834 = vadd.f32 0.0, %v1833
        %v1835 = vpop.f32.mrb[0].mxu0
        %v1836 = vpop.f32.mrb[0].mxu0
        %v1837 = vadd.f32 0.0, %v1836
        %v1838 = vpop.f32.mrb[0].mxu0
        %1839 = vmatprep.mubr.bf16.mxu0 0
        %1840 = vmatmul.mubr.bf16.gmra.mrb[0].mxu0 %v1261
        %v1841 = vpop.f32.mrb[0].mxu0
        %v1842 = vadd.f32 0.0, %v1841
        %v1843 = vpop.f32.mrb[0].mxu0
        %v1844 = vpop.f32.mrb[0].mxu0
        %v1845 = vadd.f32 0.0, %v1844
        %v1846 = vpop.f32.mrb[0].mxu0
        %1847 = vmatprep.mubr.bf16.mxu0 0
        %1848 = vmatmul.mubr.bf16.gmra.mrb[0].mxu0 %v1256
        %v1849 = vpop.f32.mrb[0].mxu0
        %v1850 = vpop.f32.mrb[0].mxu0
        %v1851 = vpop.f32.mrb[0].mxu0
        %v1852 = vpop.f32.mrb[0].mxu0
        %1853 = vdwg.mxu0
        %v1854 = vadd.f32 %v1704, %v1818
        %v1855 = vadd.f32 %v1705, %v1821
        %v1856 = vadd.f32 %v1706, %v1826
        %v1857 = vadd.f32 %v1707, %v1829
        %v1858 = vadd.f32 %v1708, %v1834
        %v1859 = vadd.f32 %v1709, %v1837
        %v1860 = vadd.f32 %v1710, %v1842
        %v1861 = vadd.f32 %v1711, %v1845
        %s1862 = scalar_lea.vmem [#allocation11], 384
        %v1863 = vld [vmem:[%s1862] sm:$0xf]
        %v1864 = vld [vmem:[%s1862 + $0x4] sm:$0xf]
        %v1865 = vld [vmem:[%s1862 + $0x8] sm:$0xf]
        %v1866 = vld [vmem:[%s1862 + $0xc] sm:$0xf]
        %v1867 = vld [vmem:[%s1862 + $0x10] sm:$0xf]
        %v1868 = vld [vmem:[%s1862 + $0x14] sm:$0xf]
        %v1869 = vld [vmem:[%s1862 + $0x18] sm:$0xf]
        %v1870 = vld [vmem:[%s1862 + $0x1c] sm:$0xf]
        %v1871 = vld [vmem:[%s1862 + $0x20] sm:$0xf]
        %v1872 = vld [vmem:[%s1862 + $0x24] sm:$0xf]
        %v1873 = vld [vmem:[%s1862 + $0x28] sm:$0xf]
        %v1874 = vld [vmem:[%s1862 + $0x2c] sm:$0xf]
        %v1875 = vld [vmem:[%s1862 + $0x30] sm:$0xf]
        %v1876 = vld [vmem:[%s1862 + $0x34] sm:$0xf]
        %v1877 = vld [vmem:[%s1862 + $0x38] sm:$0xf]
        %v1878 = vld [vmem:[%s1862 + $0x3c] sm:$0xf]
        %v1895 = vunpack.c.l.b16 %v1863
        %v1896 = vunpack.c.l.b16 %v1864
        %v1897 = vunpack.c.l.b16 %v1865
        %v1898 = vunpack.c.l.b16 %v1866
        %v1899 = vunpack.c.l.b16 %v1867
        %v1900 = vunpack.c.l.b16 %v1868
        %v1901 = vunpack.c.l.b16 %v1869
        %v1902 = vunpack.c.l.b16 %v1870
        %v1903 = vunpack.c.l.b16 %v1871
        %v1904 = vunpack.c.l.b16 %v1872
        %v1905 = vunpack.c.l.b16 %v1873
        %v1906 = vunpack.c.l.b16 %v1874
        %v1907 = vunpack.c.l.b16 %v1875
        %v1908 = vunpack.c.l.b16 %v1876
        %v1909 = vunpack.c.l.b16 %v1877
        %v1910 = vunpack.c.l.b16 %v1878
        %v1911 = vpack.c.b16 %v1896, %v1895
        %v1912 = vpack.c.b16 %v1898, %v1897
        %v1913 = vpack.c.b16 %v1900, %v1899
        %v1914 = vpack.c.b16 %v1902, %v1901
        %v1915 = vpack.c.b16 %v1904, %v1903
        %v1916 = vpack.c.b16 %v1906, %v1905
        %v1917 = vpack.c.b16 %v1908, %v1907
        %v1918 = vpack.c.b16 %v1910, %v1909
        %1927 = vmatprep.subr.bf16.mxu0 0
        %1928 = vmatpush1.bf16.msra.mxu0 %v1911
        %1929 = vmatprep.subr.bf16.mxu0 0
        %1930 = vmatpush1.bf16.msra.mxu0 %v1912
        %1931 = vmatprep.subr.bf16.mxu0 0
        %1932 = vmatpush1.bf16.msra.mxu0 %v1913
        %1933 = vmatprep.subr.bf16.mxu0 0
        %1934 = vmatpush1.bf16.msra.mxu0 %v1914
        %1935 = vmatprep.subr.bf16.mxu0 0
        %1936 = vmatpush1.bf16.msra.mxu0 %v1915
        %1937 = vmatprep.subr.bf16.mxu0 0
        %1938 = vmatpush1.bf16.msra.mxu0 %v1916
        %1939 = vmatprep.subr.bf16.mxu0 0
        %1940 = vmatpush1.bf16.msra.mxu0 %v1917
        %1941 = vmatprep.subr.bf16.mxu0 0
        %1942 = vmatpush1.bf16.msra.mxu0 %v1918
        %1943 = vmatprep.subr.bf16.mxu0 0
        %1944 = vmatpush1.bf16.msra.mxu0 0
        %1945 = vmatprep.subr.bf16.mxu0 0
        %1946 = vmatpush1.bf16.msra.mxu0 0
        %1947 = vmatprep.subr.bf16.mxu0 0
        %1948 = vmatpush1.bf16.msra.mxu0 0
        %1949 = vmatprep.subr.bf16.mxu0 0
        %1950 = vmatpush1.bf16.msra.mxu0 0
        %1951 = vmatprep.subr.bf16.mxu0 0
        %1952 = vmatpush1.bf16.msra.mxu0 0
        %1953 = vmatprep.subr.bf16.mxu0 0
        %1954 = vmatpush1.bf16.msra.mxu0 0
        %1955 = vmatprep.subr.bf16.mxu0 0
        %1956 = vmatpush1.bf16.msra.mxu0 0
        %1957 = vmatprep.subr.bf16.mxu0 0
        %1958 = vmatpush1.bf16.msra.mxu0 0
        %1959 = vmatprep.mubr.bf16.mxu0 0
        %1960 = vmatmul.mubr.bf16.gmra.mrb[0].mxu0 %v924
        %v1961 = vpop.f32.mrb[0].mxu0
        %v1962 = vpop.f32.mrb[0].mxu0
        %v1963 = vpop.f32.mrb[0].mxu0
        %v1964 = vpop.f32.mrb[0].mxu0
        %1965 = vmatprep.mubr.bf16.mxu0 0
        %1966 = vmatmul.mubr.bf16.gmra.mrb[0].mxu0 %v925
        %v1967 = vpop.f32.mrb[0].mxu0
        %v1968 = vadd.f32 0.0, %v1967
        %v1969 = vpop.f32.mrb[0].mxu0
        %v1970 = vpop.f32.mrb[0].mxu0
        %v1971 = vadd.f32 0.0, %v1970
        %v1972 = vpop.f32.mrb[0].mxu0
        %1973 = vmatprep.mubr.bf16.mxu0 0
        %1974 = vmatmul.mubr.bf16.gmra.mrb[0].mxu0 %v926
        %v1975 = vpop.f32.mrb[0].mxu0
        %v1976 = vadd.f32 0.0, %v1975
        %v1977 = vpop.f32.mrb[0].mxu0
        %v1978 = vpop.f32.mrb[0].mxu0
        %v1979 = vadd.f32 0.0, %v1978
        %v1980 = vpop.f32.mrb[0].mxu0
        %1981 = vmatprep.mubr.bf16.mxu0 0
        %1982 = vmatmul.mubr.bf16.gmra.mrb[0].mxu0 %v927
        %v1983 = vpop.f32.mrb[0].mxu0
        %v1984 = vadd.f32 0.0, %v1983
        %v1985 = vpop.f32.mrb[0].mxu0
        %v1986 = vpop.f32.mrb[0].mxu0
        %v1987 = vadd.f32 0.0, %v1986
        %v1988 = vpop.f32.mrb[0].mxu0
        %1989 = vmatprep.mubr.bf16.mxu0 0
        %1990 = vmatmul.mubr.bf16.gmra.mrb[0].mxu0 %v922
        %v1991 = vpop.f32.mrb[0].mxu0
        %v1992 = vadd.f32 0.0, %v1991
        %v1993 = vpop.f32.mrb[0].mxu0
        %v1994 = vpop.f32.mrb[0].mxu0
        %v1995 = vadd.f32 0.0, %v1994
        %v1996 = vpop.f32.mrb[0].mxu0
        %1997 = vmatprep.mubr.bf16.mxu0 0
        %1998 = vmatmul.mubr.bf16.gmra.mrb[0].mxu0 %v923
        %v1999 = vpop.f32.mrb[0].mxu0
        %v2000 = vpop.f32.mrb[0].mxu0
        %v2001 = vpop.f32.mrb[0].mxu0
        %v2002 = vpop.f32.mrb[0].mxu0
        %2003 = vdwg.mxu0
        %v2004 = vadd.f32 %v1854, %v1968
        %v2005 = vadd.f32 %v1855, %v1971
        %v2006 = vadd.f32 %v1856, %v1976
        %v2007 = vadd.f32 %v1857, %v1979
        %v2008 = vadd.f32 %v1858, %v1984
        %v2009 = vadd.f32 %v1859, %v1987
        %v2010 = vadd.f32 %v1860, %v1992
        %v2011 = vadd.f32 %v1861, %v1995
        %s2012 = scalar_lea.vmem [#allocation11], 448
        %v2013 = vld [vmem:[%s2012] sm:$0xf]
        %v2014 = vld [vmem:[%s2012 + $0x4] sm:$0xf]
        %v2015 = vld [vmem:[%s2012 + $0x8] sm:$0xf]
        %v2016 = vld [vmem:[%s2012 + $0xc] sm:$0xf]
        %v2017 = vld [vmem:[%s2012 + $0x10] sm:$0xf]
        %v2018 = vld [vmem:[%s2012 + $0x14] sm:$0xf]
        %v2019 = vld [vmem:[%s2012 + $0x18] sm:$0xf]
        %v2020 = vld [vmem:[%s2012 + $0x1c] sm:$0xf]
        %v2021 = vld [vmem:[%s2012 + $0x20] sm:$0xf]
        %v2022 = vld [vmem:[%s2012 + $0x24] sm:$0xf]
        %v2023 = vld [vmem:[%s2012 + $0x28] sm:$0xf]
        %v2024 = vld [vmem:[%s2012 + $0x2c] sm:$0xf]
        %v2025 = vld [vmem:[%s2012 + $0x30] sm:$0xf]
        %v2026 = vld [vmem:[%s2012 + $0x34] sm:$0xf]
        %v2027 = vld [vmem:[%s2012 + $0x38] sm:$0xf]
        %v2028 = vld [vmem:[%s2012 + $0x3c] sm:$0xf]
        %v2045 = vunpack.c.l.b16 %v2013
        %v2046 = vunpack.c.l.b16 %v2014
        %v2047 = vunpack.c.l.b16 %v2015
        %v2048 = vunpack.c.l.b16 %v2016
        %v2049 = vunpack.c.l.b16 %v2017
        %v2050 = vunpack.c.l.b16 %v2018
        %v2051 = vunpack.c.l.b16 %v2019
        %v2052 = vunpack.c.l.b16 %v2020
        %v2053 = vunpack.c.l.b16 %v2021
        %v2054 = vunpack.c.l.b16 %v2022
        %v2055 = vunpack.c.l.b16 %v2023
        %v2056 = vunpack.c.l.b16 %v2024
        %v2057 = vunpack.c.l.b16 %v2025
        %v2058 = vunpack.c.l.b16 %v2026
        %v2059 = vunpack.c.l.b16 %v2027
        %v2060 = vunpack.c.l.b16 %v2028
        %v2061 = vpack.c.b16 %v2046, %v2045
        %v2062 = vpack.c.b16 %v2048, %v2047
        %v2063 = vpack.c.b16 %v2050, %v2049
        %v2064 = vpack.c.b16 %v2052, %v2051
        %v2065 = vpack.c.b16 %v2054, %v2053
        %v2066 = vpack.c.b16 %v2056, %v2055
        %v2067 = vpack.c.b16 %v2058, %v2057
        %v2068 = vpack.c.b16 %v2060, %v2059
        %2077 = vmatprep.subr.bf16.mxu0 0
        %2078 = vmatpush1.bf16.msra.mxu0 %v2061
        %2079 = vmatprep.subr.bf16.mxu0 0
        %2080 = vmatpush1.bf16.msra.mxu0 %v2062
        %2081 = vmatprep.subr.bf16.mxu0 0
        %2082 = vmatpush1.bf16.msra.mxu0 %v2063
        %2083 = vmatprep.subr.bf16.mxu0 0
        %2084 = vmatpush1.bf16.msra.mxu0 %v2064
        %2085 = vmatprep.subr.bf16.mxu0 0
        %2086 = vmatpush1.bf16.msra.mxu0 %v2065
        %2087 = vmatprep.subr.bf16.mxu0 0
        %2088 = vmatpush1.bf16.msra.mxu0 %v2066
        %2089 = vmatprep.subr.bf16.mxu0 0
        %2090 = vmatpush1.bf16.msra.mxu0 %v2067
        %2091 = vmatprep.subr.bf16.mxu0 0
        %2092 = vmatpush1.bf16.msra.mxu0 %v2068
        %2093 = vmatprep.subr.bf16.mxu0 0
        %2094 = vmatpush1.bf16.msra.mxu0 0
        %2095 = vmatprep.subr.bf16.mxu0 0
        %2096 = vmatpush1.bf16.msra.mxu0 0
        %2097 = vmatprep.subr.bf16.mxu0 0
        %2098 = vmatpush1.bf16.msra.mxu0 0
        %2099 = vmatprep.subr.bf16.mxu0 0
        %2100 = vmatpush1.bf16.msra.mxu0 0
        %2101 = vmatprep.subr.bf16.mxu0 0
        %2102 = vmatpush1.bf16.msra.mxu0 0
        %2103 = vmatprep.subr.bf16.mxu0 0
        %2104 = vmatpush1.bf16.msra.mxu0 0
        %2105 = vmatprep.subr.bf16.mxu0 0
        %2106 = vmatpush1.bf16.msra.mxu0 0
        %2107 = vmatprep.subr.bf16.mxu0 0
        %2108 = vmatpush1.bf16.msra.mxu0 0
        %2109 = vmatprep.mubr.bf16.mxu0 0
        %2110 = vmatmul.mubr.bf16.gmra.mrb[0].mxu0 %v946
        %v2111 = vpop.f32.mrb[0].mxu0
        %v2112 = vpop.f32.mrb[0].mxu0
        %v2113 = vpop.f32.mrb[0].mxu0
        %v2114 = vpop.f32.mrb[0].mxu0
        %2115 = vmatprep.mubr.bf16.mxu0 0
        %2116 = vmatmul.mubr.bf16.gmra.mrb[0].mxu0 %v947
        %v2117 = vpop.f32.mrb[0].mxu0
        %v2118 = vadd.f32 0.0, %v2117
        %v2119 = vpop.f32.mrb[0].mxu0
        %v2120 = vpop.f32.mrb[0].mxu0
        %v2121 = vadd.f32 0.0, %v2120
        %v2122 = vpop.f32.mrb[0].mxu0
        %2123 = vmatprep.mubr.bf16.mxu0 0
        %2124 = vmatmul.mubr.bf16.gmra.mrb[0].mxu0 %v948
        %v2125 = vpop.f32.mrb[0].mxu0
        %v2126 = vadd.f32 0.0, %v2125
        %v2127 = vpop.f32.mrb[0].mxu0
        %v2128 = vpop.f32.mrb[0].mxu0
        %v2129 = vadd.f32 0.0, %v2128
        %v2130 = vpop.f32.mrb[0].mxu0
        %2131 = vmatprep.mubr.bf16.mxu0 0
        %2132 = vmatmul.mubr.bf16.gmra.mrb[0].mxu0 %v949
        %v2133 = vpop.f32.mrb[0].mxu0
        %v2134 = vadd.f32 0.0, %v2133
        %v2135 = vpop.f32.mrb[0].mxu0
        %v2136 = vpop.f32.mrb[0].mxu0
        %v2137 = vadd.f32 0.0, %v2136
        %v2138 = vpop.f32.mrb[0].mxu0
        %2139 = vmatprep.mubr.bf16.mxu0 0
        %2140 = vmatmul.mubr.bf16.gmra.mrb[0].mxu0 %v944
        %v2141 = vpop.f32.mrb[0].mxu0
        %v2142 = vadd.f32 0.0, %v2141
        %v2143 = vpop.f32.mrb[0].mxu0
        %v2144 = vpop.f32.mrb[0].mxu0
        %v2145 = vadd.f32 0.0, %v2144
        %v2146 = vpop.f32.mrb[0].mxu0
        %2147 = vmatprep.mubr.bf16.mxu0 0
        %2148 = vmatmul.mubr.bf16.gmra.mrb[0].mxu0 %v945
        %v2149 = vpop.f32.mrb[0].mxu0
        %v2150 = vpop.f32.mrb[0].mxu0
        %v2151 = vpop.f32.mrb[0].mxu0
        %v2152 = vpop.f32.mrb[0].mxu0
        %2153 = vdwg.mxu0
        %v2154 = vadd.f32 %v2004, %v2118
        %v2155 = vadd.f32 %v2005, %v2121
        %v2156 = vadd.f32 %v2006, %v2126
        %v2157 = vadd.f32 %v2007, %v2129
        %v2158 = vadd.f32 %v2008, %v2134
        %v2159 = vadd.f32 %v2009, %v2137
        %v2160 = vadd.f32 %v2010, %v2142
        %v2161 = vadd.f32 %v2011, %v2145
        %s2162 = scalar_lea.vmem [#allocation11], 512
        %v2163 = vld [vmem:[%s2162] sm:$0xf]
        %v2164 = vld [vmem:[%s2162 + $0x4] sm:$0xf]
        %v2165 = vld [vmem:[%s2162 + $0x8] sm:$0xf]
        %v2166 = vld [vmem:[%s2162 + $0xc] sm:$0xf]
        %v2167 = vld [vmem:[%s2162 + $0x10] sm:$0xf]
        %v2168 = vld [vmem:[%s2162 + $0x14] sm:$0xf]
        %v2169 = vld [vmem:[%s2162 + $0x18] sm:$0xf]
        %v2170 = vld [vmem:[%s2162 + $0x1c] sm:$0xf]
        %v2171 = vld [vmem:[%s2162 + $0x20] sm:$0xf]
        %v2172 = vld [vmem:[%s2162 + $0x24] sm:$0xf]
        %v2173 = vld [vmem:[%s2162 + $0x28] sm:$0xf]
        %v2174 = vld [vmem:[%s2162 + $0x2c] sm:$0xf]
        %v2175 = vld [vmem:[%s2162 + $0x30] sm:$0xf]
        %v2176 = vld [vmem:[%s2162 + $0x34] sm:$0xf]
        %v2177 = vld [vmem:[%s2162 + $0x38] sm:$0xf]
        %v2178 = vld [vmem:[%s2162 + $0x3c] sm:$0xf]
        %v2195 = vunpack.c.l.b16 %v2163
        %v2196 = vunpack.c.l.b16 %v2164
        %v2197 = vunpack.c.l.b16 %v2165
        %v2198 = vunpack.c.l.b16 %v2166
        %v2199 = vunpack.c.l.b16 %v2167
        %v2200 = vunpack.c.l.b16 %v2168
        %v2201 = vunpack.c.l.b16 %v2169
        %v2202 = vunpack.c.l.b16 %v2170
        %v2203 = vunpack.c.l.b16 %v2171
        %v2204 = vunpack.c.l.b16 %v2172
        %v2205 = vunpack.c.l.b16 %v2173
        %v2206 = vunpack.c.l.b16 %v2174
        %v2207 = vunpack.c.l.b16 %v2175
        %v2208 = vunpack.c.l.b16 %v2176
        %v2209 = vunpack.c.l.b16 %v2177
        %v2210 = vunpack.c.l.b16 %v2178
        %v2211 = vpack.c.b16 %v2196, %v2195
        %v2212 = vpack.c.b16 %v2198, %v2197
        %v2213 = vpack.c.b16 %v2200, %v2199
        %v2214 = vpack.c.b16 %v2202, %v2201
        %v2215 = vpack.c.b16 %v2204, %v2203
        %v2216 = vpack.c.b16 %v2206, %v2205
        %v2217 = vpack.c.b16 %v2208, %v2207
        %v2218 = vpack.c.b16 %v2210, %v2209
        %2227 = vmatprep.subr.bf16.mxu0 0
        %2228 = vmatpush1.bf16.msra.mxu0 %v2211
        %2229 = vmatprep.subr.bf16.mxu0 0
        %2230 = vmatpush1.bf16.msra.mxu0 %v2212
        %2231 = vmatprep.subr.bf16.mxu0 0
        %2232 = vmatpush1.bf16.msra.mxu0 %v2213
        %2233 = vmatprep.subr.bf16.mxu0 0
        %2234 = vmatpush1.bf16.msra.mxu0 %v2214
        %2235 = vmatprep.subr.bf16.mxu0 0
        %2236 = vmatpush1.bf16.msra.mxu0 %v2215
        %2237 = vmatprep.subr.bf16.mxu0 0
        %2238 = vmatpush1.bf16.msra.mxu0 %v2216
        %2239 = vmatprep.subr.bf16.mxu0 0
        %2240 = vmatpush1.bf16.msra.mxu0 %v2217
        %2241 = vmatprep.subr.bf16.mxu0 0
        %2242 = vmatpush1.bf16.msra.mxu0 %v2218
        %2243 = vmatprep.subr.bf16.mxu0 0
        %2244 = vmatpush1.bf16.msra.mxu0 0
        %2245 = vmatprep.subr.bf16.mxu0 0
        %2246 = vmatpush1.bf16.msra.mxu0 0
        %2247 = vmatprep.subr.bf16.mxu0 0
        %2248 = vmatpush1.bf16.msra.mxu0 0
        %2249 = vmatprep.subr.bf16.mxu0 0
        %2250 = vmatpush1.bf16.msra.mxu0 0
        %2251 = vmatprep.subr.bf16.mxu0 0
        %2252 = vmatpush1.bf16.msra.mxu0 0
        %2253 = vmatprep.subr.bf16.mxu0 0
        %2254 = vmatpush1.bf16.msra.mxu0 0
        %2255 = vmatprep.subr.bf16.mxu0 0
        %2256 = vmatpush1.bf16.msra.mxu0 0
        %2257 = vmatprep.subr.bf16.mxu0 0
        %2258 = vmatpush1.bf16.msra.mxu0 0
        %2259 = vmatprep.mubr.bf16.mxu0 0
        %2260 = vmatmul.mubr.bf16.gmra.mrb[0].mxu0 %v1258
        %v2261 = vpop.f32.mrb[0].mxu0
        %v2262 = vpop.f32.mrb[0].mxu0
        %v2263 = vpop.f32.mrb[0].mxu0
        %v2264 = vpop.f32.mrb[0].mxu0
        %2265 = vmatprep.mubr.bf16.mxu0 0
        %2266 = vmatmul.mubr.bf16.gmra.mrb[0].mxu0 %v1259
        %v2267 = vpop.f32.mrb[0].mxu0
        %v2268 = vadd.f32 0.0, %v2267
        %v2269 = vpop.f32.mrb[0].mxu0
        %v2270 = vpop.f32.mrb[0].mxu0
        %v2271 = vadd.f32 0.0, %v2270
        %v2272 = vpop.f32.mrb[0].mxu0
        %2273 = vmatprep.mubr.bf16.mxu0 0
        %2274 = vmatmul.mubr.bf16.gmra.mrb[0].mxu0 %v1260
        %v2275 = vpop.f32.mrb[0].mxu0
        %v2276 = vadd.f32 0.0, %v2275
        %v2277 = vpop.f32.mrb[0].mxu0
        %v2278 = vpop.f32.mrb[0].mxu0
        %v2279 = vadd.f32 0.0, %v2278
        %v2280 = vpop.f32.mrb[0].mxu0
        %2281 = vmatprep.mubr.bf16.mxu0 0
        %2282 = vmatmul.mubr.bf16.gmra.mrb[0].mxu0 %v1261
        %v2283 = vpop.f32.mrb[0].mxu0
        %v2284 = vadd.f32 0.0, %v2283
        %v2285 = vpop.f32.mrb[0].mxu0
        %v2286 = vpop.f32.mrb[0].mxu0
        %v2287 = vadd.f32 0.0, %v2286
        %v2288 = vpop.f32.mrb[0].mxu0
        %2289 = vmatprep.mubr.bf16.mxu0 0
        %2290 = vmatmul.mubr.bf16.gmra.mrb[0].mxu0 %v1256
        %v2291 = vpop.f32.mrb[0].mxu0
        %v2292 = vadd.f32 0.0, %v2291
        %v2293 = vpop.f32.mrb[0].mxu0
        %v2294 = vpop.f32.mrb[0].mxu0
        %v2295 = vadd.f32 0.0, %v2294
        %v2296 = vpop.f32.mrb[0].mxu0
        %2297 = vmatprep.mubr.bf16.mxu0 0
        %2298 = vmatmul.mubr.bf16.gmra.mrb[0].mxu0 %v1257
        %v2299 = vpop.f32.mrb[0].mxu0
        %v2300 = vpop.f32.mrb[0].mxu0
        %v2301 = vpop.f32.mrb[0].mxu0
        %v2302 = vpop.f32.mrb[0].mxu0
        %2303 = vdwg.mxu0
        %v2304 = vadd.f32 %v2154, %v2268
        %v2305 = vadd.f32 %v2155, %v2271
        %v2306 = vadd.f32 %v2156, %v2276
        %v2307 = vadd.f32 %v2157, %v2279
        %v2308 = vadd.f32 %v2158, %v2284
        %v2309 = vadd.f32 %v2159, %v2287
        %v2310 = vadd.f32 %v2160, %v2292
        %v2311 = vadd.f32 %v2161, %v2295
        %v2312 = vld [vmem:[%s6] sm:$0x1]
        %v2314 = vlaneseq
        %v2315 = vshrl.u32 %v2314, 7
        %v2316 = vsub.s32 0, %v2315
        %v2317 = vrot.slane %v2312, %v2316
        %v2319 = vadd.f32 %v2304, %v2317
        %v2320 = vadd.f32 %v2305, %v2317
        %v2321 = vadd.f32 %v2306, %v2317
        %v2322 = vadd.f32 %v2307, %v2317
        %v2323 = vadd.f32 %v2308, %v2317
        %v2324 = vadd.f32 %v2309, %v2317
        %v2325 = vadd.f32 %v2310, %v2317
        %v2326 = vadd.f32 %v2311, %v2317
        %v2327 = vmax.f32 %v2319, 0.0
        %v2328 = vmax.f32 %v2320, 0.0
        %v2329 = vmax.f32 %v2321, 0.0
        %v2330 = vmax.f32 %v2322, 0.0
        %v2331 = vmax.f32 %v2323, 0.0
        %v2332 = vmax.f32 %v2324, 0.0
        %v2333 = vmax.f32 %v2325, 0.0
        %v2334 = vmax.f32 %v2326, 0.0
        %v2335 = vpack.c.bf16 %v2328, %v2327
        %v2336 = vpack.c.bf16 %v2330, %v2329
        %v2337 = vpack.c.bf16 %v2332, %v2331
        %v2338 = vpack.c.bf16 %v2334, %v2333
        %v2339 = vld [vmem:[#allocation12] sm:$0xf]
        %v2340 = vld [vmem:[#allocation12 + $0x4] sm:$0xf]
        %v2341 = vld [vmem:[#allocation12 + $0x8] sm:$0xf]
        %v2342 = vld [vmem:[#allocation12 + $0xc] sm:$0xf]
        %v2343 = vld [vmem:[#allocation12 + $0x10] sm:$0xf]
        %v2344 = vld [vmem:[#allocation12 + $0x14] sm:$0xf]
        %v2345 = vld [vmem:[#allocation12 + $0x18] sm:$0xf]
        %v2346 = vld [vmem:[#allocation12 + $0x1c] sm:$0xf]
        %v2347 = vld [vmem:[#allocation12 + $0x20] sm:$0xf]
        %v2348 = vld [vmem:[#allocation12 + $0x24] sm:$0xf]
        %v2349 = vld [vmem:[#allocation12 + $0x28] sm:$0xf]
        %v2350 = vld [vmem:[#allocation12 + $0x2c] sm:$0xf]
        %v2351 = vld [vmem:[#allocation12 + $0x30] sm:$0xf]
        %v2352 = vld [vmem:[#allocation12 + $0x34] sm:$0xf]
        %v2353 = vld [vmem:[#allocation12 + $0x38] sm:$0xf]
        %v2354 = vld [vmem:[#allocation12 + $0x3c] sm:$0xf]
        %v2355 = vld [vmem:[%s448] sm:$0xf]
        %v2356 = vld [vmem:[%s448 + $0x4] sm:$0xf]
        %v2357 = vld [vmem:[%s448 + $0x8] sm:$0xf]
        %v2358 = vld [vmem:[%s448 + $0xc] sm:$0xf]
        %v2359 = vld [vmem:[%s448 + $0x10] sm:$0xf]
        %v2360 = vld [vmem:[%s448 + $0x14] sm:$0xf]
        %v2361 = vld [vmem:[%s448 + $0x18] sm:$0xf]
        %v2362 = vld [vmem:[%s448 + $0x1c] sm:$0xf]
        %v2363 = vunpack.c.l.bf16 %v2355
        %v2364 = vunpack.c.l.bf16 %v2356
        %v2365 = vunpack.c.l.bf16 %v2357
        %v2366 = vunpack.c.l.bf16 %v2358
        %v2367 = vunpack.c.l.bf16 %v2359
        %v2368 = vunpack.c.l.bf16 %v2360
        %v2369 = vunpack.c.l.bf16 %v2361
        %v2370 = vunpack.c.l.bf16 %v2362
        %v2371 = vld [vmem:[%s8] sm:$0x1]
        %v2373 = vlaneseq
        %v2374 = vshrl.u32 %v2373, 7
        %v2375 = vsub.s32 0, %v2374
        %v2376 = vrot.slane %v2371, %v2375
        %v2394 = vunpack.c.l.b16 %v2339
        %v2395 = vunpack.c.l.b16 %v2340
        %v2396 = vunpack.c.l.b16 %v2341
        %v2397 = vunpack.c.l.b16 %v2342
        %v2398 = vunpack.c.l.b16 %v2343
        %v2399 = vunpack.c.l.b16 %v2344
        %v2400 = vunpack.c.l.b16 %v2345
        %v2401 = vunpack.c.l.b16 %v2346
        %v2402 = vunpack.c.l.b16 %v2347
        %v2403 = vunpack.c.l.b16 %v2348
        %v2404 = vunpack.c.l.b16 %v2349
        %v2405 = vunpack.c.l.b16 %v2350
        %v2406 = vunpack.c.l.b16 %v2351
        %v2407 = vunpack.c.l.b16 %v2352
        %v2408 = vunpack.c.l.b16 %v2353
        %v2409 = vunpack.c.l.b16 %v2354
        %v2410 = vpack.c.b16 %v2395, %v2394
        %v2411 = vpack.c.b16 %v2397, %v2396
        %v2412 = vpack.c.b16 %v2399, %v2398
        %v2413 = vpack.c.b16 %v2401, %v2400
        %v2414 = vpack.c.b16 %v2403, %v2402
        %v2415 = vpack.c.b16 %v2405, %v2404
        %v2416 = vpack.c.b16 %v2407, %v2406
        %v2417 = vpack.c.b16 %v2409, %v2408
        %2426 = vmatprep.subr.bf16.mxu0 0
        %2427 = vmatpush1.bf16.msra.mxu0 %v2410
        %2428 = vmatprep.subr.bf16.mxu0 0
        %2429 = vmatpush1.bf16.msra.mxu0 %v2411
        %2430 = vmatprep.subr.bf16.mxu0 0
        %2431 = vmatpush1.bf16.msra.mxu0 %v2412
        %2432 = vmatprep.subr.bf16.mxu0 0
        %2433 = vmatpush1.bf16.msra.mxu0 %v2413
        %2434 = vmatprep.subr.bf16.mxu0 0
        %2435 = vmatpush1.bf16.msra.mxu0 %v2414
        %2436 = vmatprep.subr.bf16.mxu0 0
        %2437 = vmatpush1.bf16.msra.mxu0 %v2415
        %2438 = vmatprep.subr.bf16.mxu0 0
        %2439 = vmatpush1.bf16.msra.mxu0 %v2416
        %2440 = vmatprep.subr.bf16.mxu0 0
        %2441 = vmatpush1.bf16.msra.mxu0 %v2417
        %2442 = vmatprep.subr.bf16.mxu0 0
        %2443 = vmatpush1.bf16.msra.mxu0 0
        %2444 = vmatprep.subr.bf16.mxu0 0
        %2445 = vmatpush1.bf16.msra.mxu0 0
        %2446 = vmatprep.subr.bf16.mxu0 0
        %2447 = vmatpush1.bf16.msra.mxu0 0
        %2448 = vmatprep.subr.bf16.mxu0 0
        %2449 = vmatpush1.bf16.msra.mxu0 0
        %2450 = vmatprep.subr.bf16.mxu0 0
        %2451 = vmatpush1.bf16.msra.mxu0 0
        %2452 = vmatprep.subr.bf16.mxu0 0
        %2453 = vmatpush1.bf16.msra.mxu0 0
        %2454 = vmatprep.subr.bf16.mxu0 0
        %2455 = vmatpush1.bf16.msra.mxu0 0
        %2456 = vmatprep.subr.bf16.mxu0 0
        %2457 = vmatpush1.bf16.msra.mxu0 0
        %2458 = vmatprep.mubr.bf16.mxu0 0
        %2459 = vmatmul.mubr.bf16.gmra.mrb[0].mxu0 %v2335
        %v2460 = vpop.f32.mrb[0].mxu0
        %v2461 = vadd.f32 %v2376, %v2460
        %v2462 = vpop.f32.mrb[0].mxu0
        %v2463 = vpop.f32.mrb[0].mxu0
        %v2464 = vadd.f32 %v2376, %v2463
        %v2465 = vpop.f32.mrb[0].mxu0
        %2466 = vmatprep.mubr.bf16.mxu0 0
        %2467 = vmatmul.mubr.bf16.gmra.mrb[0].mxu0 %v2336
        %v2468 = vpop.f32.mrb[0].mxu0
        %v2469 = vadd.f32 %v2376, %v2468
        %v2470 = vpop.f32.mrb[0].mxu0
        %v2471 = vpop.f32.mrb[0].mxu0
        %v2472 = vadd.f32 %v2376, %v2471
        %v2473 = vpop.f32.mrb[0].mxu0
        %2474 = vmatprep.mubr.bf16.mxu0 0
        %2475 = vmatmul.mubr.bf16.gmra.mrb[0].mxu0 %v2337
        %v2476 = vpop.f32.mrb[0].mxu0
        %v2477 = vadd.f32 %v2376, %v2476
        %v2478 = vpop.f32.mrb[0].mxu0
        %v2479 = vpop.f32.mrb[0].mxu0
        %v2480 = vadd.f32 %v2376, %v2479
        %v2481 = vpop.f32.mrb[0].mxu0
        %2482 = vmatprep.mubr.bf16.mxu0 0
        %2483 = vmatmul.mubr.bf16.gmra.mrb[0].mxu0 %v2338
        %v2484 = vpop.f32.mrb[0].mxu0
        %v2485 = vadd.f32 %v2376, %v2484
        %v2486 = vpop.f32.mrb[0].mxu0
        %v2487 = vpop.f32.mrb[0].mxu0
        %v2488 = vadd.f32 %v2376, %v2487
        %v2489 = vpop.f32.mrb[0].mxu0
        %2490 = vdwg.mxu0
        %v2491 = vadd.f32 %v2461, %v2363
        %v2492 = vadd.f32 %v2464, %v2364
        %v2493 = vadd.f32 %v2469, %v2365
        %v2494 = vadd.f32 %v2472, %v2366
        %v2495 = vadd.f32 %v2477, %v2367
        %v2496 = vadd.f32 %v2480, %v2368
        %v2497 = vadd.f32 %v2485, %v2369
        %v2498 = vadd.f32 %v2488, %v2370
        %v2499 = vmax.f32 %v2491, 0.0
        %v2500 = vmax.f32 %v2492, 0.0
        %v2501 = vmax.f32 %v2493, 0.0
        %v2502 = vmax.f32 %v2494, 0.0
        %v2503 = vmax.f32 %v2495, 0.0
        %v2504 = vmax.f32 %v2496, 0.0
        %v2505 = vmax.f32 %v2497, 0.0
        %v2506 = vmax.f32 %v2498, 0.0
        %v2507 = vpack.c.bf16 %v2500, %v2499
        %v2508 = vpack.c.bf16 %v2502, %v2501
        %v2509 = vpack.c.bf16 %v2504, %v2503
        %v2510 = vpack.c.bf16 %v2506, %v2505
        %v2515 = vunpack.c.l.b16 %v2507
        %v2516 = vunpack.c.h.b16 %v2507
        %v2517 = vunpack.c.l.b16 %v2508
        %v2518 = vunpack.c.h.b16 %v2508
        %v2519 = vunpack.c.l.b16 %v2509
        %v2520 = vunpack.c.h.b16 %v2509
        %v2521 = vunpack.c.l.b16 %v2510
        %v2522 = vunpack.c.h.b16 %v2510
        %v2523 = vpack.c.b16 %v2515, %v2515
        %v2524 = vpack.c.b16 %v2516, %v2516
        %v2525 = vpack.c.b16 %v2517, %v2517
        %v2526 = vpack.c.b16 %v2518, %v2518
        %v2527 = vpack.c.b16 %v2519, %v2519
        %v2528 = vpack.c.b16 %v2520, %v2520
        %v2529 = vpack.c.b16 %v2521, %v2521
        %v2530 = vpack.c.b16 %v2522, %v2522
        %2539 = vst [vmem:[%s522] sm:$0xf] %v2523
        %2540 = vst [vmem:[%s522 + $0x4] sm:$0xf] %v2524
        %2541 = vst [vmem:[%s522 + $0x8] sm:$0xf] %v2525
        %2542 = vst [vmem:[%s522 + $0xc] sm:$0xf] %v2526
        %2543 = vst [vmem:[%s522 + $0x10] sm:$0xf] %v2527
        %2544 = vst [vmem:[%s522 + $0x14] sm:$0xf] %v2528
        %2545 = vst [vmem:[%s522 + $0x18] sm:$0xf] %v2529
        %2546 = vst [vmem:[%s522 + $0x1c] sm:$0xf] %v2530
        %s2547 = sand.u32 %s279, 1
        %s2548 = scalar_lea.sflag [#allocation5], %s2547
        %s2549 = sand.u32 %s279, 1
        %s2550 = smul.addr %s2549, 32
        %s2551 = scalar_lea.vmem [#allocation14], %s2550
        // Predicated region
        $region81: #{tpu_custom_call.1} parent=55 // pred_check
          %p2552 = pneg %p289
        $region82: #{tpu_custom_call.1} parent=55 // pred_check_branch
          %2554 = sbr.rel (%p2552) target = $region84
        $region83: #{tpu_custom_call.1} parent=55 // pred_region
          %s2555 = smul.u32 4, %s36
          %s2557 = ssub.s32 512, 512
          %2558 = vsyncadd %s2548, %s2557
          %s2559 = smul.addr %s2555, 2
          %s2560 = smul.addr %s35, 32
          %s2561 = sadd.s32 %s2559, %s2560
          %s2562 = smul.addr %s2561, 64
          %s2563 = scalar_lea.hbm %s9, %s2562
          %s2564 = sshll.u32 %s2551, 4
          %s2565 = int_to_ptr.vmem [resolvable:$true] %s2564
          %2570 = dma.vmem_to_hbm [thread:$0]  %s2565, 512, %s2563, %s2548, 64, 64, 4
        $region84: #{tpu_custom_call.1} parent=55 // pred_fallthru
          _
      $region56: #{tpu_custom_call.1} parent=5 // pred_fallthru
        _
      %p2571 = scmp.le.s32.totalorder 2, %s26
      // Predicated region
      $region85: #{tpu_custom_call.1} parent=5 // pred_check
        %p2572 = pneg %p2571
      $region86: #{tpu_custom_call.1} parent=5 // pred_check_branch
        %2574 = sbr.rel (%p2572) target = $region88
      $region87: #{tpu_custom_call.1} parent=5 // pred_region
        %s2575 = ssub.s32 %s26, 2
        // Predicated region
        $region89: #{tpu_custom_call.1} parent=87 // pred_check
          %p2576 = pneg %p295
        $region90: #{tpu_custom_call.1} parent=87 // pred_check_branch
          %2578 = sbr.rel (%p2576) target = $region92
        $region91: #{tpu_custom_call.1} parent=87 // pred_region
          %s2579 = sand.u32 %s280, 1
          %s2580 = scalar_lea.sflag [#allocation5], %s2579
          %s2581 = sand.u32 %s280, 1
          %s2582 = smul.addr %s2581, 32
          %s2583 = scalar_lea.vmem [#allocation14], %s2582
          %2584 = dma.done %s2580, 512
        $region92: #{tpu_custom_call.1} parent=87 // pred_fallthru
          _
      $region88: #{tpu_custom_call.1} parent=5 // pred_fallthru
        _
    $region6: #{tpu_custom_call.1} parent=1 // loop_footer
      %s30 = sadd.s32 1, %s26
    $region7: #{tpu_custom_call.1} parent=1 // loop_footer_branch
      %25 = sbr.rel target = $region3
    $region8: #{tpu_custom_call.1} parent=1 // loop_exit
      _
    %2585 = vsyncpa [#allocation4], 1
    %s2586 = scalar_lea.sflag [#allocation4], 1
    %2587 = vsyncpa %s2586, 1
    %2588 = vsyncpa [#allocation7], 1
    %s2589 = scalar_lea.sflag [#allocation7], 1
    %2590 = vsyncpa %s2589, 1
    %2591 = vsyncpa [#allocation10], 1
    %2592 = vsyncpa [#allocation13], 1
    %2593 = vsyncpa [#allocation5], 1
    %s2594 = scalar_lea.sflag [#allocation5], 1
    %2595 = vsyncpa %s2594, 1

</llo_original>
